<compile_context>
chip_gen: v6e
topology: v6e:2x2x1
jax: 0.10.0
libtpu: 0.0.40
codegen_flags: <defaults>
</compile_context>

<pallas_src>
import functools
import math

import jax
import jax.numpy as jnp
from jax.experimental import pallas as pl
from jax.experimental.pallas import tpu as pltpu

N_CLASSES = 10
N_HIDDEN = 800
BN_EPS = 1e-5

LANE = 128
SUBLANE = 8
H_PAD = 1024   # 800 -> 1024: aligned to 128-lane vregs and 256-wide v6e/v7x MXU tiles
C_PAD = 128    # 10  -> 128 : lane-dense output store


def _round_up(n, m):
    return ((n + m - 1) // m) * m


def _hidden_kernel(x_ref, w1_ref, b1_ref, h_ref, psum_ref, psumsq_ref,
                   *, tb, b_true, use_bf16):
    """h = GELU(x @ W1 + b1); padded batch rows zeroed; per-tile BN partial stats."""
    x = x_ref[...]
    w1 = w1_ref[...]
    if use_bf16:
        x = x.astype(jnp.bfloat16)
        w1 = w1.astype(jnp.bfloat16)

    h = jnp.dot(x, w1, preferred_element_type=jnp.float32) + b1_ref[...]

    # exact-erf GELU (matches nn.GELU() default)
    h = 0.5 * h * (1.0 + jax.lax.erf(h * (1.0 / math.sqrt(2.0))))

    # mask batch-padding rows so they do not pollute the BatchNorm statistics
    rows = jax.lax.broadcasted_iota(jnp.int32, (tb, 1), 0) + pl.program_id(0) * tb
    h = jnp.where(rows < b_true, h, 0.0)

    h_ref[...] = h

    ps = jnp.sum(h, axis=0, keepdims=True)          # (1, H_PAD)
    pss = jnp.sum(h * h, axis=0, keepdims=True)     # (1, H_PAD)
    # replicate across the 8 sublanes of the (1, 8, H_PAD) output block (kept
    # sublane-aligned; the wrapper reads sublane 0 only)
    psum_ref[...] = jnp.broadcast_to(ps, (1, SUBLANE, H_PAD))
    psumsq_ref[...] = jnp.broadcast_to(pss, (1, SUBLANE, H_PAD))


def _output_kernel(h_ref, w2_ref, b2_ref, o_ref, *, use_bf16):
    """out = h @ W2_folded + b2_folded (BatchNorm already folded into W2/b2)."""
    h = h_ref[...]
    w2 = w2_ref[...]
    if use_bf16:
        h = h.astype(jnp.bfloat16)
        w2 = w2.astype(jnp.bfloat16)
    out = jnp.dot(h, w2, preferred_element_type=jnp.float32) + b2_ref[...]
    o_ref[...] = out.astype(o_ref.dtype)


def fully_connected_forward(img_batch, params, *, use_bf16_matmul=False):
    """img_batch: (B, C, H, W) NCHW.  Returns (B, N_CLASSES) fp32 logits."""
    b = img_batch.shape[0]
    x = img_batch.reshape(b, -1).astype(jnp.float32)  # same flatten order as nn.Flatten
    d = x.shape[1]
    w1, b1, gamma, beta, w2, b2 = params

    d_pad = _round_up(d, LANE)
    tb = min(256, _round_up(b, SUBLANE))   # batch tile: multiple of 8, <=256 (v7x-safe)
    b_pad = _round_up(b, tb)
    nt = b_pad // tb

    # zero-pad to lane/sublane-aligned shapes (exact: padded hidden features are
    # identically zero through GELU, get gamma=beta=0 and zero W2 rows)
    x_p = jnp.zeros((b_pad, d_pad), jnp.float32).at[:b, :d].set(x)
    w1_p = jnp.zeros((d_pad, H_PAD), jnp.float32).at[:d, :N_HIDDEN].set(w1)
    b1_p = jnp.zeros((1, H_PAD), jnp.float32).at[0, :N_HIDDEN].set(b1)
    gamma_p = jnp.zeros((H_PAD,), jnp.float32).at[:N_HIDDEN].set(gamma)
    beta_p = jnp.zeros((H_PAD,), jnp.float32).at[:N_HIDDEN].set(beta)
    w2_p = jnp.zeros((H_PAD, C_PAD), jnp.float32).at[:N_HIDDEN, :N_CLASSES].set(w2)
    b2_p = jnp.zeros((1, C_PAD), jnp.float32).at[0, :N_CLASSES].set(b2)

    parallel = pltpu.CompilerParams(dimension_semantics=("parallel",))

    # ---- Kernel 1: Linear1 + GELU, per-tile BN partial statistics -------------
    h, psum, psumsq = pl.pallas_call(
        functools.partial(_hidden_kernel, tb=tb, b_true=b, use_bf16=use_bf16_matmul),
        grid=(nt,),
        in_specs=[
            pl.BlockSpec((tb, d_pad), lambda i: (i, 0)),
            pl.BlockSpec((d_pad, H_PAD), lambda i: (0, 0)),
            pl.BlockSpec((1, H_PAD), lambda i: (0, 0)),
        ],
        out_specs=(
            pl.BlockSpec((tb, H_PAD), lambda i: (i, 0)),
            pl.BlockSpec((1, SUBLANE, H_PAD), lambda i: (i, 0, 0)),
            pl.BlockSpec((1, SUBLANE, H_PAD), lambda i: (i, 0, 0)),
        ),
        out_shape=(
            jax.ShapeDtypeStruct((b_pad, H_PAD), jnp.float32),
            jax.ShapeDtypeStruct((nt, SUBLANE, H_PAD), jnp.float32),
            jax.ShapeDtypeStruct((nt, SUBLANE, H_PAD), jnp.float32),
        ),
        compiler_params=parallel,
    )(x_p, w1_p, b1_p)

    # ---- Tiny glue: finalize train-mode BN stats and fold them into Linear2 ----
    bsum = jnp.sum(psum[:, 0, :], axis=0)                     # (H_PAD,)
    bsumsq = jnp.sum(psumsq[:, 0, :], axis=0)                 # (H_PAD,)
    mean = bsum / b
    var = jnp.maximum(bsumsq / b - mean * mean, 0.0)          # biased variance (train mode)
    scale = gamma_p * jax.lax.rsqrt(var + BN_EPS)             # (H_PAD,)
    shift = beta_p - mean * scale                             # (H_PAD,)
    w2_folded = w2_p * scale[:, None]                         # (H_PAD, C_PAD)
    b2_folded = (shift @ w2_p)[None, :] + b2_p                # (1, C_PAD)

    # ---- Kernel 2: folded Linear2 into a lane-dense (TB, 128) output ----------
    out = pl.pallas_call(
        functools.partial(_output_kernel, use_bf16=use_bf16_matmul),
        grid=(nt,),
        in_specs=[
            pl.BlockSpec((tb, H_PAD), lambda i: (i, 0)),
            pl.BlockSpec((H_PAD, C_PAD), lambda i: (0, 0)),
            pl.BlockSpec((1, C_PAD), lambda i: (0, 0)),
        ],
        out_specs=pl.BlockSpec((tb, C_PAD), lambda i: (i, 0)),
        out_shape=jax.ShapeDtypeStruct((b_pad, C_PAD), jnp.float32),
        compiler_params=parallel,
    )(h, w2_folded, b2_folded)

    return out[:b, :N_CLASSES]


def init_params(key, d_in):
    """Deterministic synthetic init (shapes match the PyTorch module; w1/w2 pre-transposed)."""
    k1, k2, k3, k4 = jax.random.split(key, 4)
    lim1 = 1.0 / math.sqrt(d_in)
    w1 = jax.random.uniform(k1, (d_in, N_HIDDEN), jnp.float32, -lim1, lim1)
    b1 = jax.random.uniform(k2, (N_HIDDEN,), jnp.float32, -lim1, lim1)
    gamma = jnp.ones((N_HIDDEN,), jnp.float32)   # PyTorch BatchNorm1d default affine init
    beta = jnp.zeros((N_HIDDEN,), jnp.float32)
    lim2 = 1.0 / math.sqrt(N_HIDDEN)
    w2 = jax.random.uniform(k3, (N_HIDDEN, N_CLASSES), jnp.float32, -lim2, lim2)
    b2 = jax.random.uniform(k4, (N_CLASSES,), jnp.float32, -lim2, lim2)
    return (w1, b1, gamma, beta, w2, b2)


def _reference_forward(img_batch, params):
    """Pure-jnp reference matching the PyTorch module (train-mode BatchNorm)."""
    w1, b1, gamma, beta, w2, b2 = params
    x = img_batch.reshape(img_batch.shape[0], -1).astype(jnp.float32)
    h = x @ w1 + b1
    h = 0.5 * h * (1.0 + jax.lax.erf(h * (1.0 / math.sqrt(2.0))))
    mean = jnp.mean(h, axis=0, keepdims=True)
    var = jnp.mean((h - mean) ** 2, axis=0, keepdims=True)
    hn = (h - mean) * jax.lax.rsqrt(var + BN_EPS) * gamma + beta
    return hn @ w2 + b2


if __name__ == "__main__":
    key = jax.random.PRNGKey(0)
    k_img, k_param = jax.random.split(key)

    # Small example image batch (NCHW), consistent with "example_img.numel()"
    B, C, H, W = 2, 4, 16, 16
    img_batch = jax.random.normal(k_img, (B, C, H, W), jnp.float32)

    params = init_params(k_param, C * H * W)

    logits = fully_connected_forward(img_batch, params)
    logits = jax.block_until_ready(logits)

    assert logits.shape == (B, N_CLASSES)
    assert bool(jnp.all(jnp.isfinite(logits)))

    # parity check against the pure-jnp reference (fp32, exact-erf GELU, train-mode BN)
    ref = _reference_forward(img_batch, params)
    assert float(jnp.max(jnp.abs(logits - ref))) < 1e-2

    print("KERNEL_OK")
</pallas_src>

<mosaic_0001>
module attributes {stable_mosaic.version = 11 : i64} {
  func.func @_hidden_kernel(%arg0: i32, %arg1: memref<8x1024xf32, #tpu.memory_space<vmem>>, %arg2: memref<1024x1024xf32, #tpu.memory_space<vmem>>, %arg3: memref<1x1024xf32, #tpu.memory_space<vmem>>, %arg4: memref<8x1024xf32, #tpu.memory_space<vmem>>, %arg5: memref<1x8x1024xf32, #tpu.memory_space<vmem>>, %arg6: memref<1x8x1024xf32, #tpu.memory_space<vmem>>) attributes {dimension_semantics = [#tpu.dimension_semantics<parallel>], iteration_bounds = array<i64: 1>, scalar_prefetch = 0 : i64, scratch_operands = 0 : i64, tpu.core_type = #tpu.core_type<tc>, window_params = [{transform_indices = @transform_0, window_bounds = array<i64: 8, 1024>}, {pipeline_mode = #tpu.pipeline_mode<synchronous>, transform_indices = @transform_1, window_bounds = array<i64: 1024, 1024>}, {pipeline_mode = #tpu.pipeline_mode<synchronous>, transform_indices = @transform_2, window_bounds = array<i64: 1, 1024>}, {transform_indices = @transform_3, window_bounds = array<i64: 8, 1024>}, {transform_indices = @transform_4, window_bounds = array<i64: 1, 8, 1024>}, {transform_indices = @transform_5, window_bounds = array<i64: 1, 8, 1024>}]} {
    %c0 = arith.constant 0 : index
    %c0_0 = arith.constant 0 : index
    %0 = vector.load %arg1[%c0, %c0_0] : memref<8x1024xf32, #tpu.memory_space<vmem>>, vector<8x1024xf32>
    %c0_1 = arith.constant 0 : index
    %c0_2 = arith.constant 0 : index
    %1 = vector.load %arg2[%c0_1, %c0_2] : memref<1024x1024xf32, #tpu.memory_space<vmem>>, vector<1024x1024xf32>
    %cst = arith.constant dense<0.000000e+00> : vector<8x1024xf32>
    %2 = tpu.matmul %0, %1, %cst {dimension_numbers = #tpu.dot_dimension_numbers<[1], [0], [0], [1], [0, 0, 1, 1], [], []>} : vector<8x1024xf32>, vector<1024x1024xf32>, vector<8x1024xf32> -> vector<8x1024xf32>
    %c0_3 = arith.constant 0 : index
    %c0_4 = arith.constant 0 : index
    %3 = vector.load %arg3[%c0_3, %c0_4] : memref<1x1024xf32, #tpu.memory_space<vmem>>, vector<1x1024xf32>
    %4 = vector.broadcast %3 : vector<1x1024xf32> to vector<8x1024xf32>
    %5 = arith.addf %2, %4 : vector<8x1024xf32>
    %cst_5 = arith.constant 5.000000e-01 : f32
    %6 = vector.broadcast %cst_5 : f32 to vector<8x1024xf32>
    %7 = arith.mulf %6, %5 : vector<8x1024xf32>
    %cst_6 = arith.constant 0.707106769 : f32
    %8 = vector.broadcast %cst_6 : f32 to vector<8x1024xf32>
    %9 = arith.mulf %5, %8 : vector<8x1024xf32>
    %10 = math.erf %9 : vector<8x1024xf32>
    %cst_7 = arith.constant 1.000000e+00 : f32
    %11 = vector.broadcast %cst_7 : f32 to vector<8x1024xf32>
    %12 = arith.addf %11, %10 : vector<8x1024xf32>
    %13 = arith.mulf %7, %12 : vector<8x1024xf32>
    %14 = tpu.iota {dimensions = array<i32: 0>} : vector<8x1xi32>
    %c8_i32 = arith.constant 8 : i32
    %15 = arith.muli %arg0, %c8_i32 : i32
    %16 = vector.broadcast %15 : i32 to vector<8x1xi32>
    %17 = arith.addi %14, %16 : vector<8x1xi32>
    %c2_i32 = arith.constant 2 : i32
    %18 = vector.broadcast %c2_i32 : i32 to vector<8x1xi32>
    %19 = arith.cmpi slt, %17, %18 : vector<8x1xi32>
    %cst_8 = arith.constant 0.000000e+00 : f32
    %20 = vector.shape_cast %19 : vector<8x1xi1> to vector<8x1xi1>
    %21 = vector.broadcast %20 : vector<8x1xi1> to vector<8x1024xi1>
    %22 = vector.broadcast %cst_8 : f32 to vector<8x1024xf32>
    %23 = arith.select %21, %13, %22 : vector<8x1024xi1>, vector<8x1024xf32>
    %c0_9 = arith.constant 0 : index
    %c0_10 = arith.constant 0 : index
    %24 = vector.load %arg4[%c0_9, %c0_10] : memref<8x1024xf32, #tpu.memory_space<vmem>>, vector<8x1024xf32>
    tpu.vector_store %arg4[%c0_9, %c0_10], %23 {strides = array<i32>} : memref<8x1024xf32, #tpu.memory_space<vmem>>, vector<8x1024xf32>,
    %cst_11 = arith.constant dense<0.000000e+00> : vector<1024xf32>
    %25 = vector.multi_reduction <add>, %23, %cst_11 [0] : vector<8x1024xf32> to vector<1024xf32>
    %26 = vector.shape_cast %25 : vector<1024xf32> to vector<1x1024xf32>
    %27 = arith.mulf %23, %23 : vector<8x1024xf32>
    %cst_12 = arith.constant dense<0.000000e+00> : vector<1024xf32>
    %28 = vector.multi_reduction <add>, %27, %cst_12 [0] : vector<8x1024xf32> to vector<1024xf32>
    %29 = vector.shape_cast %28 : vector<1024xf32> to vector<1x1024xf32>
    %30 = vector.shape_cast %26 : vector<1x1024xf32> to vector<1x1x1024xf32>
    %31 = vector.broadcast %30 : vector<1x1x1024xf32> to vector<1x8x1024xf32>
    %c0_13 = arith.constant 0 : index
    %c0_14 = arith.constant 0 : index
    %c0_15 = arith.constant 0 : index
    %32 = vector.load %arg5[%c0_13, %c0_14, %c0_15] : memref<1x8x1024xf32, #tpu.memory_space<vmem>>, vector<1x8x1024xf32>
    tpu.vector_store %arg5[%c0_13, %c0_14, %c0_15], %31 {strides = array<i32>} : memref<1x8x1024xf32, #tpu.memory_space<vmem>>, vector<1x8x1024xf32>,
    %33 = vector.shape_cast %29 : vector<1x1024xf32> to vector<1x1x1024xf32>
    %34 = vector.broadcast %33 : vector<1x1x1024xf32> to vector<1x8x1024xf32>
    %c0_16 = arith.constant 0 : index
    %c0_17 = arith.constant 0 : index
    %c0_18 = arith.constant 0 : index
    %35 = vector.load %arg6[%c0_16, %c0_17, %c0_18] : memref<1x8x1024xf32, #tpu.memory_space<vmem>>, vector<1x8x1024xf32>
    tpu.vector_store %arg6[%c0_16, %c0_17, %c0_18], %34 {strides = array<i32>} : memref<1x8x1024xf32, #tpu.memory_space<vmem>>, vector<1x8x1024xf32>,
    return
  }
  func.func @transform_0(%arg0: i32) -> (i32, i32) {
    %c0_i32 = arith.constant 0 : i32
    %c0_i32_0 = arith.constant 0 : i32
    return %arg0, %c0_i32 : i32, i32
  }
  func.func @transform_1(%arg0: i32) -> (i32, i32) {
    %c0_i32 = arith.constant 0 : i32
    %c0_i32_0 = arith.constant 0 : i32
    %c0_i32_1 = arith.constant 0 : i32
    return %c0_i32, %c0_i32_0 : i32, i32
  }
  func.func @transform_2(%arg0: i32) -> (i32, i32) {
    %c0_i32 = arith.constant 0 : i32
    %c0_i32_0 = arith.constant 0 : i32
    %c0_i32_1 = arith.constant 0 : i32
    return %c0_i32, %c0_i32_0 : i32, i32
  }
  func.func @transform_3(%arg0: i32) -> (i32, i32) {
    %c0_i32 = arith.constant 0 : i32
    %c0_i32_0 = arith.constant 0 : i32
    return %arg0, %c0_i32 : i32, i32
  }
  func.func @transform_4(%arg0: i32) -> (i32, i32, i32) {
    %c0_i32 = arith.constant 0 : i32
    %c0_i32_0 = arith.constant 0 : i32
    %c0_i32_1 = arith.constant 0 : i32
    return %arg0, %c0_i32, %c0_i32_0 : i32, i32, i32
  }
  func.func @transform_5(%arg0: i32) -> (i32, i32, i32) {
    %c0_i32 = arith.constant 0 : i32
    %c0_i32_0 = arith.constant 0 : i32
    %c0_i32_1 = arith.constant 0 : i32
    return %arg0, %c0_i32, %c0_i32_0 : i32, i32, i32
  }
}

</mosaic_0001>

<llo_original>
// kernel: tpu_custom_call.1
$region0: #{tpu_custom_call.1}
  #allocation0 [shape = 'u32[]', space=smem, size = 0x4, offset = 0x4, fixed_abs, tag = 'smem constant byte address 0x4 - core index']
  #allocation1 [shape = 'u32[144,128]{1,0:T(1,128)}', space=vmem, size = 0x12000, scoped, tag = 'internal scratch']
  %s0 = inlined_call_operand.hbm [shape: f32[8,1024], index: 0, kind: input, shape index: {}]
  %s1 = inlined_call_operand.hbm [shape: f32[1024,1024], index: 1, kind: input, shape index: {}]
  %s2 = inlined_call_operand.hbm [shape: f32[1,1024], index: 2, kind: input, shape index: {}]
  %s3 = inlined_call_operand.hbm [shape: f32[8,1024], index: 3, kind: output, shape index: {0}]
  %s4 = inlined_call_operand.hbm [shape: f32[1,8,1024], index: 4, kind: output, shape index: {1}]
  %s5 = inlined_call_operand.hbm [shape: f32[1,8,1024], index: 5, kind: output, shape index: {2}]
  %6 = xla_tuple %s3, %s4, %s5
  %s7 = sld [smem:[#allocation0]]
  $region50: #{tpu_custom_call.1} parent=0
    _
  %s9 = ssub.s32 1, %s7
  %s10 = scalar_select 0, %s9, %s7
  $region1: #{tpu_custom_call.1} parent=0
    #allocation2 [shape = 'u8[32768]{0}', space=vmem, size = 0x8000, scoped, tag = 'input window, operand 0, single buffered']
    #allocation3 [shape = 's32[1]{0}', space=sflag, size = 0x4, scoped, tag = 'scoped memory for tpu_custom_call.1']
    #allocation4 [shape = 's32[1]{0}', space=sflag, size = 0x4, scoped, tag = 'scoped memory for tpu_custom_call.1']
    #allocation5 [shape = 'u8[4194304]{0}', space=vmem, size = 0x400000, scoped, tag = 'input window, operand 1, single buffered']
    #allocation6 [shape = 's32[1]{0}', space=sflag, size = 0x4, scoped, tag = 'scoped memory for tpu_custom_call.1']
    #allocation7 [shape = 'u8[4096]{0}', space=vmem, size = 0x1000, scoped, tag = 'input window, operand 2, single buffered']
    #allocation8 [shape = 'u8[32768]{0}', space=vmem, size = 0x8000, scoped, tag = 'output window, operand 0, single buffered']
    #allocation9 [shape = 'u8[32768]{0}', space=vmem, size = 0x8000, scoped, tag = 'output window, operand 1, single buffered']
    #allocation10 [shape = 's32[1]{0}', space=sflag, size = 0x4, scoped, tag = 'scoped memory for tpu_custom_call.1']
    #allocation11 [shape = 'u8[32768]{0}', space=vmem, size = 0x8000, scoped, tag = 'output window, operand 2, single buffered']
    %11 = vsyncpa [#allocation3], 0
    %12 = vsyncpa [#allocation6], 0
    %13 = vsyncpa [#allocation4], 0
    %14 = vsyncpa [#allocation10], 0
    // Predicated region
    $region2: #{tpu_custom_call.1} parent=1 // pred_check
      _
    $region3: #{tpu_custom_call.1} parent=1 // pred_check_branch
      %16 = sbr.rel (0) target = $region5
    $region4: #{tpu_custom_call.1} parent=1 // pred_region
      %s18 = ssub.s32 1024, 1024
      %19 = vsyncadd [#allocation3], %s18
      %s21 = sshll.u32 [#allocation2], 4
      %s22 = int_to_ptr.vmem [resolvable:$true] %s21
      %24 = dma.hbm_to_vmem [thread:$0]  %s0, 1024, %s22, [#allocation3]
    $region5: #{tpu_custom_call.1} parent=1 // pred_fallthru
      _
    // Predicated region
    $region6: #{tpu_custom_call.1} parent=1 // pred_check
      _
    $region7: #{tpu_custom_call.1} parent=1 // pred_check_branch
      %26 = sbr.rel (0) target = $region9
    $region8: #{tpu_custom_call.1} parent=1 // pred_region
      %s28 = ssub.s32 131072, 131072
      %29 = vsyncadd [#allocation6], %s28
      %s30 = sshll.u32 [#allocation5], 4
      %s31 = int_to_ptr.vmem [resolvable:$true] %s30
      %36 = dma.hbm_to_vmem [thread:$0]  %s1, 131072, %s31, [#allocation6], 1024, 1024, 64
    $region9: #{tpu_custom_call.1} parent=1 // pred_fallthru
      _
    // Predicated region
    $region10: #{tpu_custom_call.1} parent=1 // pred_check
      _
    $region11: #{tpu_custom_call.1} parent=1 // pred_check_branch
      %38 = sbr.rel (0) target = $region13
    $region12: #{tpu_custom_call.1} parent=1 // pred_region
      %s40 = ssub.s32 128, 128
      %41 = vsyncadd [#allocation6], %s40
      %s43 = sshll.u32 [#allocation7], 4
      %s44 = int_to_ptr.vmem [resolvable:$true] %s43
      %46 = dma.hbm_to_vmem [thread:$0]  %s2, 128, %s44, [#allocation6]
    $region13: #{tpu_custom_call.1} parent=1 // pred_fallthru
      _
    // Predicated region
    $region14: #{tpu_custom_call.1} parent=1 // pred_check
      _
    $region15: #{tpu_custom_call.1} parent=1 // pred_check_branch
      %48 = sbr.rel (0) target = $region17
    $region16: #{tpu_custom_call.1} parent=1 // pred_region
      %49 = dma.done [#allocation3], 1024
    $region17: #{tpu_custom_call.1} parent=1 // pred_fallthru
      _
    // Predicated region
    $region18: #{tpu_custom_call.1} parent=1 // pred_check
      _
    $region19: #{tpu_custom_call.1} parent=1 // pred_check_branch
      %51 = sbr.rel (0) target = $region21
    $region20: #{tpu_custom_call.1} parent=1 // pred_region
      %52 = dma.done [#allocation6], 131072
    $region21: #{tpu_custom_call.1} parent=1 // pred_fallthru
      _
    // Predicated region
    $region22: #{tpu_custom_call.1} parent=1 // pred_check
      _
    $region23: #{tpu_custom_call.1} parent=1 // pred_check_branch
      %54 = sbr.rel (0) target = $region25
    $region24: #{tpu_custom_call.1} parent=1 // pred_region
      %55 = dma.done [#allocation6], 128
    $region25: #{tpu_custom_call.1} parent=1 // pred_fallthru
      _
    %v56 = vld [vmem:[#allocation2] sm:$0xff]
    %v57 = vld [vmem:[#allocation2 + $0x8] sm:$0xff]
    %v58 = vld [vmem:[#allocation2 + $0x10] sm:$0xff]
    %v59 = vld [vmem:[#allocation2 + $0x18] sm:$0xff]
    %v60 = vld [vmem:[#allocation2 + $0x20] sm:$0xff]
    %v61 = vld [vmem:[#allocation2 + $0x28] sm:$0xff]
    %v62 = vld [vmem:[#allocation2 + $0x30] sm:$0xff]
    %v63 = vld [vmem:[#allocation2 + $0x38] sm:$0xff]
    %v64 = vld [vmem:[#allocation5] sm:$0xff]
    %v65 = vld [vmem:[#allocation5 + $0x8] sm:$0xff]
    %v66 = vld [vmem:[#allocation5 + $0x10] sm:$0xff]
    %v67 = vld [vmem:[#allocation5 + $0x18] sm:$0xff]
    %v68 = vld [vmem:[#allocation5 + $0x20] sm:$0xff]
    %v69 = vld [vmem:[#allocation5 + $0x28] sm:$0xff]
    %v70 = vld [vmem:[#allocation5 + $0x30] sm:$0xff]
    %v71 = vld [vmem:[#allocation5 + $0x38] sm:$0xff]
    %v72 = vld [vmem:[#allocation5 + $0x40] sm:$0xff]
    %v73 = vld [vmem:[#allocation5 + $0x48] sm:$0xff]
    %v74 = vld [vmem:[#allocation5 + $0x50] sm:$0xff]
    %v75 = vld [vmem:[#allocation5 + $0x58] sm:$0xff]
    %v76 = vld [vmem:[#allocation5 + $0x60] sm:$0xff]
    %v77 = vld [vmem:[#allocation5 + $0x68] sm:$0xff]
    %v78 = vld [vmem:[#allocation5 + $0x70] sm:$0xff]
    %v79 = vld [vmem:[#allocation5 + $0x78] sm:$0xff]
    %v80 = vld [vmem:[#allocation5 + $0x80] sm:$0xff]
    %v81 = vld [vmem:[#allocation5 + $0x88] sm:$0xff]
    %v82 = vld [vmem:[#allocation5 + $0x90] sm:$0xff]
    %v83 = vld [vmem:[#allocation5 + $0x98] sm:$0xff]
    %v84 = vld [vmem:[#allocation5 + $0xa0] sm:$0xff]
    %v85 = vld [vmem:[#allocation5 + $0xa8] sm:$0xff]
    %v86 = vld [vmem:[#allocation5 + $0xb0] sm:$0xff]
    %v87 = vld [vmem:[#allocation5 + $0xb8] sm:$0xff]
    %v88 = vld [vmem:[#allocation5 + $0xc0] sm:$0xff]
    %v89 = vld [vmem:[#allocation5 + $0xc8] sm:$0xff]
    %v90 = vld [vmem:[#allocation5 + $0xd0] sm:$0xff]
    %v91 = vld [vmem:[#allocation5 + $0xd8] sm:$0xff]
    %v92 = vld [vmem:[#allocation5 + $0xe0] sm:$0xff]
    %v93 = vld [vmem:[#allocation5 + $0xe8] sm:$0xff]
    %v94 = vld [vmem:[#allocation5 + $0xf0] sm:$0xff]
    %v95 = vld [vmem:[#allocation5 + $0xf8] sm:$0xff]
    %v96 = vld [vmem:[#allocation5 + $0x100] sm:$0xff]
    %v97 = vld [vmem:[#allocation5 + $0x108] sm:$0xff]
    %v98 = vld [vmem:[#allocation5 + $0x110] sm:$0xff]
    %v99 = vld [vmem:[#allocation5 + $0x118] sm:$0xff]
    %v100 = vld [vmem:[#allocation5 + $0x120] sm:$0xff]
    %v101 = vld [vmem:[#allocation5 + $0x128] sm:$0xff]
    %v102 = vld [vmem:[#allocation5 + $0x130] sm:$0xff]
    %v103 = vld [vmem:[#allocation5 + $0x138] sm:$0xff]
    %v104 = vld [vmem:[#allocation5 + $0x140] sm:$0xff]
    %v105 = vld [vmem:[#allocation5 + $0x148] sm:$0xff]
    %v106 = vld [vmem:[#allocation5 + $0x150] sm:$0xff]
    %v107 = vld [vmem:[#allocation5 + $0x158] sm:$0xff]
    %v108 = vld [vmem:[#allocation5 + $0x160] sm:$0xff]
    %v109 = vld [vmem:[#allocation5 + $0x168] sm:$0xff]
    %v110 = vld [vmem:[#allocation5 + $0x170] sm:$0xff]
    %v111 = vld [vmem:[#allocation5 + $0x178] sm:$0xff]
    %v112 = vld [vmem:[#allocation5 + $0x180] sm:$0xff]
    %v113 = vld [vmem:[#allocation5 + $0x188] sm:$0xff]
    %v114 = vld [vmem:[#allocation5 + $0x190] sm:$0xff]
    %v115 = vld [vmem:[#allocation5 + $0x198] sm:$0xff]
    %v116 = vld [vmem:[#allocation5 + $0x1a0] sm:$0xff]
    %v117 = vld [vmem:[#allocation5 + $0x1a8] sm:$0xff]
    %v118 = vld [vmem:[#allocation5 + $0x1b0] sm:$0xff]
    %v119 = vld [vmem:[#allocation5 + $0x1b8] sm:$0xff]
    %v120 = vld [vmem:[#allocation5 + $0x1c0] sm:$0xff]
    %v121 = vld [vmem:[#allocation5 + $0x1c8] sm:$0xff]
    %v122 = vld [vmem:[#allocation5 + $0x1d0] sm:$0xff]
    %v123 = vld [vmem:[#allocation5 + $0x1d8] sm:$0xff]
    %v124 = vld [vmem:[#allocation5 + $0x1e0] sm:$0xff]
    %v125 = vld [vmem:[#allocation5 + $0x1e8] sm:$0xff]
    %v126 = vld [vmem:[#allocation5 + $0x1f0] sm:$0xff]
    %v127 = vld [vmem:[#allocation5 + $0x1f8] sm:$0xff]
    %v128 = vld [vmem:[#allocation5 + $0x200] sm:$0xff]
    %v129 = vld [vmem:[#allocation5 + $0x208] sm:$0xff]
    %v130 = vld [vmem:[#allocation5 + $0x210] sm:$0xff]
    %v131 = vld [vmem:[#allocation5 + $0x218] sm:$0xff]
    %v132 = vld [vmem:[#allocation5 + $0x220] sm:$0xff]
    %v133 = vld [vmem:[#allocation5 + $0x228] sm:$0xff]
    %v134 = vld [vmem:[#allocation5 + $0x230] sm:$0xff]
    %v135 = vld [vmem:[#allocation5 + $0x238] sm:$0xff]
    %v136 = vld [vmem:[#allocation5 + $0x240] sm:$0xff]
    %v137 = vld [vmem:[#allocation5 + $0x248] sm:$0xff]
    %v138 = vld [vmem:[#allocation5 + $0x250] sm:$0xff]
    %v139 = vld [vmem:[#allocation5 + $0x258] sm:$0xff]
    %v140 = vld [vmem:[#allocation5 + $0x260] sm:$0xff]
    %v141 = vld [vmem:[#allocation5 + $0x268] sm:$0xff]
    %v142 = vld [vmem:[#allocation5 + $0x270] sm:$0xff]
    %v143 = vld [vmem:[#allocation5 + $0x278] sm:$0xff]
    %v144 = vld [vmem:[#allocation5 + $0x280] sm:$0xff]
    %v145 = vld [vmem:[#allocation5 + $0x288] sm:$0xff]
    %v146 = vld [vmem:[#allocation5 + $0x290] sm:$0xff]
    %v147 = vld [vmem:[#allocation5 + $0x298] sm:$0xff]
    %v148 = vld [vmem:[#allocation5 + $0x2a0] sm:$0xff]
    %v149 = vld [vmem:[#allocation5 + $0x2a8] sm:$0xff]
    %v150 = vld [vmem:[#allocation5 + $0x2b0] sm:$0xff]
    %v151 = vld [vmem:[#allocation5 + $0x2b8] sm:$0xff]
    %v152 = vld [vmem:[#allocation5 + $0x2c0] sm:$0xff]
    %v153 = vld [vmem:[#allocation5 + $0x2c8] sm:$0xff]
    %v154 = vld [vmem:[#allocation5 + $0x2d0] sm:$0xff]
    %v155 = vld [vmem:[#allocation5 + $0x2d8] sm:$0xff]
    %v156 = vld [vmem:[#allocation5 + $0x2e0] sm:$0xff]
    %v157 = vld [vmem:[#allocation5 + $0x2e8] sm:$0xff]
    %v158 = vld [vmem:[#allocation5 + $0x2f0] sm:$0xff]
    %v159 = vld [vmem:[#allocation5 + $0x2f8] sm:$0xff]
    %v160 = vld [vmem:[#allocation5 + $0x300] sm:$0xff]
    %v161 = vld [vmem:[#allocation5 + $0x308] sm:$0xff]
    %v162 = vld [vmem:[#allocation5 + $0x310] sm:$0xff]
    %v163 = vld [vmem:[#allocation5 + $0x318] sm:$0xff]
    %v164 = vld [vmem:[#allocation5 + $0x320] sm:$0xff]
    %v165 = vld [vmem:[#allocation5 + $0x328] sm:$0xff]
    %v166 = vld [vmem:[#allocation5 + $0x330] sm:$0xff]
    %v167 = vld [vmem:[#allocation5 + $0x338] sm:$0xff]
    %v168 = vld [vmem:[#allocation5 + $0x340] sm:$0xff]
    %v169 = vld [vmem:[#allocation5 + $0x348] sm:$0xff]
    %v170 = vld [vmem:[#allocation5 + $0x350] sm:$0xff]
    %v171 = vld [vmem:[#allocation5 + $0x358] sm:$0xff]
    %v172 = vld [vmem:[#allocation5 + $0x360] sm:$0xff]
    %v173 = vld [vmem:[#allocation5 + $0x368] sm:$0xff]
    %v174 = vld [vmem:[#allocation5 + $0x370] sm:$0xff]
    %v175 = vld [vmem:[#allocation5 + $0x378] sm:$0xff]
    %v176 = vld [vmem:[#allocation5 + $0x380] sm:$0xff]
    %v177 = vld [vmem:[#allocation5 + $0x388] sm:$0xff]
    %v178 = vld [vmem:[#allocation5 + $0x390] sm:$0xff]
    %v179 = vld [vmem:[#allocation5 + $0x398] sm:$0xff]
    %v180 = vld [vmem:[#allocation5 + $0x3a0] sm:$0xff]
    %v181 = vld [vmem:[#allocation5 + $0x3a8] sm:$0xff]
    %v182 = vld [vmem:[#allocation5 + $0x3b0] sm:$0xff]
    %v183 = vld [vmem:[#allocation5 + $0x3b8] sm:$0xff]
    %v184 = vld [vmem:[#allocation5 + $0x3c0] sm:$0xff]
    %v185 = vld [vmem:[#allocation5 + $0x3c8] sm:$0xff]
    %v186 = vld [vmem:[#allocation5 + $0x3d0] sm:$0xff]
    %v187 = vld [vmem:[#allocation5 + $0x3d8] sm:$0xff]
    %v188 = vld [vmem:[#allocation5 + $0x3e0] sm:$0xff]
    %v189 = vld [vmem:[#allocation5 + $0x3e8] sm:$0xff]
    %v190 = vld [vmem:[#allocation5 + $0x3f0] sm:$0xff]
    %v191 = vld [vmem:[#allocation5 + $0x3f8] sm:$0xff]
    %v192 = vld [vmem:[#allocation5 + $0x400] sm:$0xff]
    %v193 = vld [vmem:[#allocation5 + $0x408] sm:$0xff]
    %v194 = vld [vmem:[#allocation5 + $0x410] sm:$0xff]
    %v195 = vld [vmem:[#allocation5 + $0x418] sm:$0xff]
    %v196 = vld [vmem:[#allocation5 + $0x420] sm:$0xff]
    %v197 = vld [vmem:[#allocation5 + $0x428] sm:$0xff]
    %v198 = vld [vmem:[#allocation5 + $0x430] sm:$0xff]
    %v199 = vld [vmem:[#allocation5 + $0x438] sm:$0xff]
    %v200 = vld [vmem:[#allocation5 + $0x440] sm:$0xff]
    %v201 = vld [vmem:[#allocation5 + $0x448] sm:$0xff]
    %v202 = vld [vmem:[#allocation5 + $0x450] sm:$0xff]
    %v203 = vld [vmem:[#allocation5 + $0x458] sm:$0xff]
    %v204 = vld [vmem:[#allocation5 + $0x460] sm:$0xff]
    %v205 = vld [vmem:[#allocation5 + $0x468] sm:$0xff]
    %v206 = vld [vmem:[#allocation5 + $0x470] sm:$0xff]
    %v207 = vld [vmem:[#allocation5 + $0x478] sm:$0xff]
    %v208 = vld [vmem:[#allocation5 + $0x480] sm:$0xff]
    %v209 = vld [vmem:[#allocation5 + $0x488] sm:$0xff]
    %v210 = vld [vmem:[#allocation5 + $0x490] sm:$0xff]
    %v211 = vld [vmem:[#allocation5 + $0x498] sm:$0xff]
    %v212 = vld [vmem:[#allocation5 + $0x4a0] sm:$0xff]
    %v213 = vld [vmem:[#allocation5 + $0x4a8] sm:$0xff]
    %v214 = vld [vmem:[#allocation5 + $0x4b0] sm:$0xff]
    %v215 = vld [vmem:[#allocation5 + $0x4b8] sm:$0xff]
    %v216 = vld [vmem:[#allocation5 + $0x4c0] sm:$0xff]
    %v217 = vld [vmem:[#allocation5 + $0x4c8] sm:$0xff]
    %v218 = vld [vmem:[#allocation5 + $0x4d0] sm:$0xff]
    %v219 = vld [vmem:[#allocation5 + $0x4d8] sm:$0xff]
    %v220 = vld [vmem:[#allocation5 + $0x4e0] sm:$0xff]
    %v221 = vld [vmem:[#allocation5 + $0x4e8] sm:$0xff]
    %v222 = vld [vmem:[#allocation5 + $0x4f0] sm:$0xff]
    %v223 = vld [vmem:[#allocation5 + $0x4f8] sm:$0xff]
    %v224 = vld [vmem:[#allocation5 + $0x500] sm:$0xff]
    %v225 = vld [vmem:[#allocation5 + $0x508] sm:$0xff]
    %v226 = vld [vmem:[#allocation5 + $0x510] sm:$0xff]
    %v227 = vld [vmem:[#allocation5 + $0x518] sm:$0xff]
    %v228 = vld [vmem:[#allocation5 + $0x520] sm:$0xff]
    %v229 = vld [vmem:[#allocation5 + $0x528] sm:$0xff]
    %v230 = vld [vmem:[#allocation5 + $0x530] sm:$0xff]
    %v231 = vld [vmem:[#allocation5 + $0x538] sm:$0xff]
    %v232 = vld [vmem:[#allocation5 + $0x540] sm:$0xff]
    %v233 = vld [vmem:[#allocation5 + $0x548] sm:$0xff]
    %v234 = vld [vmem:[#allocation5 + $0x550] sm:$0xff]
    %v235 = vld [vmem:[#allocation5 + $0x558] sm:$0xff]
    %v236 = vld [vmem:[#allocation5 + $0x560] sm:$0xff]
    %v237 = vld [vmem:[#allocation5 + $0x568] sm:$0xff]
    %v238 = vld [vmem:[#allocation5 + $0x570] sm:$0xff]
    %v239 = vld [vmem:[#allocation5 + $0x578] sm:$0xff]
    %v240 = vld [vmem:[#allocation5 + $0x580] sm:$0xff]
    %v241 = vld [vmem:[#allocation5 + $0x588] sm:$0xff]
    %v242 = vld [vmem:[#allocation5 + $0x590] sm:$0xff]
    %v243 = vld [vmem:[#allocation5 + $0x598] sm:$0xff]
    %v244 = vld [vmem:[#allocation5 + $0x5a0] sm:$0xff]
    %v245 = vld [vmem:[#allocation5 + $0x5a8] sm:$0xff]
    %v246 = vld [vmem:[#allocation5 + $0x5b0] sm:$0xff]
    %v247 = vld [vmem:[#allocation5 + $0x5b8] sm:$0xff]
    %v248 = vld [vmem:[#allocation5 + $0x5c0] sm:$0xff]
    %v249 = vld [vmem:[#allocation5 + $0x5c8] sm:$0xff]
    %v250 = vld [vmem:[#allocation5 + $0x5d0] sm:$0xff]
    %v251 = vld [vmem:[#allocation5 + $0x5d8] sm:$0xff]
    %v252 = vld [vmem:[#allocation5 + $0x5e0] sm:$0xff]
    %v253 = vld [vmem:[#allocation5 + $0x5e8] sm:$0xff]
    %v254 = vld [vmem:[#allocation5 + $0x5f0] sm:$0xff]
    %v255 = vld [vmem:[#allocation5 + $0x5f8] sm:$0xff]
    %v256 = vld [vmem:[#allocation5 + $0x600] sm:$0xff]
    %v257 = vld [vmem:[#allocation5 + $0x608] sm:$0xff]
    %v258 = vld [vmem:[#allocation5 + $0x610] sm:$0xff]
    %v259 = vld [vmem:[#allocation5 + $0x618] sm:$0xff]
    %v260 = vld [vmem:[#allocation5 + $0x620] sm:$0xff]
    %v261 = vld [vmem:[#allocation5 + $0x628] sm:$0xff]
    %v262 = vld [vmem:[#allocation5 + $0x630] sm:$0xff]
    %v263 = vld [vmem:[#allocation5 + $0x638] sm:$0xff]
    %v264 = vld [vmem:[#allocation5 + $0x640] sm:$0xff]
    %v265 = vld [vmem:[#allocation5 + $0x648] sm:$0xff]
    %v266 = vld [vmem:[#allocation5 + $0x650] sm:$0xff]
    %v267 = vld [vmem:[#allocation5 + $0x658] sm:$0xff]
    %v268 = vld [vmem:[#allocation5 + $0x660] sm:$0xff]
    %v269 = vld [vmem:[#allocation5 + $0x668] sm:$0xff]
    %v270 = vld [vmem:[#allocation5 + $0x670] sm:$0xff]
    %v271 = vld [vmem:[#allocation5 + $0x678] sm:$0xff]
    %v272 = vld [vmem:[#allocation5 + $0x680] sm:$0xff]
    %v273 = vld [vmem:[#allocation5 + $0x688] sm:$0xff]
    %v274 = vld [vmem:[#allocation5 + $0x690] sm:$0xff]
    %v275 = vld [vmem:[#allocation5 + $0x698] sm:$0xff]
    %v276 = vld [vmem:[#allocation5 + $0x6a0] sm:$0xff]
    %v277 = vld [vmem:[#allocation5 + $0x6a8] sm:$0xff]
    %v278 = vld [vmem:[#allocation5 + $0x6b0] sm:$0xff]
    %v279 = vld [vmem:[#allocation5 + $0x6b8] sm:$0xff]
    %v280 = vld [vmem:[#allocation5 + $0x6c0] sm:$0xff]
    %v281 = vld [vmem:[#allocation5 + $0x6c8] sm:$0xff]
    %v282 = vld [vmem:[#allocation5 + $0x6d0] sm:$0xff]
    %v283 = vld [vmem:[#allocation5 + $0x6d8] sm:$0xff]
    %v284 = vld [vmem:[#allocation5 + $0x6e0] sm:$0xff]
    %v285 = vld [vmem:[#allocation5 + $0x6e8] sm:$0xff]
    %v286 = vld [vmem:[#allocation5 + $0x6f0] sm:$0xff]
    %v287 = vld [vmem:[#allocation5 + $0x6f8] sm:$0xff]
    %v288 = vld [vmem:[#allocation5 + $0x700] sm:$0xff]
    %v289 = vld [vmem:[#allocation5 + $0x708] sm:$0xff]
    %v290 = vld [vmem:[#allocation5 + $0x710] sm:$0xff]
    %v291 = vld [vmem:[#allocation5 + $0x718] sm:$0xff]
    %v292 = vld [vmem:[#allocation5 + $0x720] sm:$0xff]
    %v293 = vld [vmem:[#allocation5 + $0x728] sm:$0xff]
    %v294 = vld [vmem:[#allocation5 + $0x730] sm:$0xff]
    %v295 = vld [vmem:[#allocation5 + $0x738] sm:$0xff]
    %v296 = vld [vmem:[#allocation5 + $0x740] sm:$0xff]
    %v297 = vld [vmem:[#allocation5 + $0x748] sm:$0xff]
    %v298 = vld [vmem:[#allocation5 + $0x750] sm:$0xff]
    %v299 = vld [vmem:[#allocation5 + $0x758] sm:$0xff]
    %v300 = vld [vmem:[#allocation5 + $0x760] sm:$0xff]
    %v301 = vld [vmem:[#allocation5 + $0x768] sm:$0xff]
    %v302 = vld [vmem:[#allocation5 + $0x770] sm:$0xff]
    %v303 = vld [vmem:[#allocation5 + $0x778] sm:$0xff]
    %v304 = vld [vmem:[#allocation5 + $0x780] sm:$0xff]
    %v305 = vld [vmem:[#allocation5 + $0x788] sm:$0xff]
    %v306 = vld [vmem:[#allocation5 + $0x790] sm:$0xff]
    %v307 = vld [vmem:[#allocation5 + $0x798] sm:$0xff]
    %v308 = vld [vmem:[#allocation5 + $0x7a0] sm:$0xff]
    %v309 = vld [vmem:[#allocation5 + $0x7a8] sm:$0xff]
    %v310 = vld [vmem:[#allocation5 + $0x7b0] sm:$0xff]
    %v311 = vld [vmem:[#allocation5 + $0x7b8] sm:$0xff]
    %v312 = vld [vmem:[#allocation5 + $0x7c0] sm:$0xff]
    %v313 = vld [vmem:[#allocation5 + $0x7c8] sm:$0xff]
    %v314 = vld [vmem:[#allocation5 + $0x7d0] sm:$0xff]
    %v315 = vld [vmem:[#allocation5 + $0x7d8] sm:$0xff]
    %v316 = vld [vmem:[#allocation5 + $0x7e0] sm:$0xff]
    %v317 = vld [vmem:[#allocation5 + $0x7e8] sm:$0xff]
    %v318 = vld [vmem:[#allocation5 + $0x7f0] sm:$0xff]
    %v319 = vld [vmem:[#allocation5 + $0x7f8] sm:$0xff]
    %v320 = vld [vmem:[#allocation5 + $0x800] sm:$0xff]
    %v321 = vld [vmem:[#allocation5 + $0x808] sm:$0xff]
    %v322 = vld [vmem:[#allocation5 + $0x810] sm:$0xff]
    %v323 = vld [vmem:[#allocation5 + $0x818] sm:$0xff]
    %v324 = vld [vmem:[#allocation5 + $0x820] sm:$0xff]
    %v325 = vld [vmem:[#allocation5 + $0x828] sm:$0xff]
    %v326 = vld [vmem:[#allocation5 + $0x830] sm:$0xff]
    %v327 = vld [vmem:[#allocation5 + $0x838] sm:$0xff]
    %v328 = vld [vmem:[#allocation5 + $0x840] sm:$0xff]
    %v329 = vld [vmem:[#allocation5 + $0x848] sm:$0xff]
    %v330 = vld [vmem:[#allocation5 + $0x850] sm:$0xff]
    %v331 = vld [vmem:[#allocation5 + $0x858] sm:$0xff]
    %v332 = vld [vmem:[#allocation5 + $0x860] sm:$0xff]
    %v333 = vld [vmem:[#allocation5 + $0x868] sm:$0xff]
    %v334 = vld [vmem:[#allocation5 + $0x870] sm:$0xff]
    %v335 = vld [vmem:[#allocation5 + $0x878] sm:$0xff]
    %v336 = vld [vmem:[#allocation5 + $0x880] sm:$0xff]
    %v337 = vld [vmem:[#allocation5 + $0x888] sm:$0xff]
    %v338 = vld [vmem:[#allocation5 + $0x890] sm:$0xff]
    %v339 = vld [vmem:[#allocation5 + $0x898] sm:$0xff]
    %v340 = vld [vmem:[#allocation5 + $0x8a0] sm:$0xff]
    %v341 = vld [vmem:[#allocation5 + $0x8a8] sm:$0xff]
    %v342 = vld [vmem:[#allocation5 + $0x8b0] sm:$0xff]
    %v343 = vld [vmem:[#allocation5 + $0x8b8] sm:$0xff]
    %v344 = vld [vmem:[#allocation5 + $0x8c0] sm:$0xff]
    %v345 = vld [vmem:[#allocation5 + $0x8c8] sm:$0xff]
    %v346 = vld [vmem:[#allocation5 + $0x8d0] sm:$0xff]
    %v347 = vld [vmem:[#allocation5 + $0x8d8] sm:$0xff]
    %v348 = vld [vmem:[#allocation5 + $0x8e0] sm:$0xff]
    %v349 = vld [vmem:[#allocation5 + $0x8e8] sm:$0xff]
    %v350 = vld [vmem:[#allocation5 + $0x8f0] sm:$0xff]
    %v351 = vld [vmem:[#allocation5 + $0x8f8] sm:$0xff]
    %v352 = vld [vmem:[#allocation5 + $0x900] sm:$0xff]
    %v353 = vld [vmem:[#allocation5 + $0x908] sm:$0xff]
    %v354 = vld [vmem:[#allocation5 + $0x910] sm:$0xff]
    %v355 = vld [vmem:[#allocation5 + $0x918] sm:$0xff]
    %v356 = vld [vmem:[#allocation5 + $0x920] sm:$0xff]
    %v357 = vld [vmem:[#allocation5 + $0x928] sm:$0xff]
    %v358 = vld [vmem:[#allocation5 + $0x930] sm:$0xff]
    %v359 = vld [vmem:[#allocation5 + $0x938] sm:$0xff]
    %v360 = vld [vmem:[#allocation5 + $0x940] sm:$0xff]
    %v361 = vld [vmem:[#allocation5 + $0x948] sm:$0xff]
    %v362 = vld [vmem:[#allocation5 + $0x950] sm:$0xff]
    %v363 = vld [vmem:[#allocation5 + $0x958] sm:$0xff]
    %v364 = vld [vmem:[#allocation5 + $0x960] sm:$0xff]
    %v365 = vld [vmem:[#allocation5 + $0x968] sm:$0xff]
    %v366 = vld [vmem:[#allocation5 + $0x970] sm:$0xff]
    %v367 = vld [vmem:[#allocation5 + $0x978] sm:$0xff]
    %v368 = vld [vmem:[#allocation5 + $0x980] sm:$0xff]
    %v369 = vld [vmem:[#allocation5 + $0x988] sm:$0xff]
    %v370 = vld [vmem:[#allocation5 + $0x990] sm:$0xff]
    %v371 = vld [vmem:[#allocation5 + $0x998] sm:$0xff]
    %v372 = vld [vmem:[#allocation5 + $0x9a0] sm:$0xff]
    %v373 = vld [vmem:[#allocation5 + $0x9a8] sm:$0xff]
    %v374 = vld [vmem:[#allocation5 + $0x9b0] sm:$0xff]
    %v375 = vld [vmem:[#allocation5 + $0x9b8] sm:$0xff]
    %v376 = vld [vmem:[#allocation5 + $0x9c0] sm:$0xff]
    %v377 = vld [vmem:[#allocation5 + $0x9c8] sm:$0xff]
    %v378 = vld [vmem:[#allocation5 + $0x9d0] sm:$0xff]
    %v379 = vld [vmem:[#allocation5 + $0x9d8] sm:$0xff]
    %v380 = vld [vmem:[#allocation5 + $0x9e0] sm:$0xff]
    %v381 = vld [vmem:[#allocation5 + $0x9e8] sm:$0xff]
    %v382 = vld [vmem:[#allocation5 + $0x9f0] sm:$0xff]
    %v383 = vld [vmem:[#allocation5 + $0x9f8] sm:$0xff]
    %v384 = vld [vmem:[#allocation5 + $0xa00] sm:$0xff]
    %v385 = vld [vmem:[#allocation5 + $0xa08] sm:$0xff]
    %v386 = vld [vmem:[#allocation5 + $0xa10] sm:$0xff]
    %v387 = vld [vmem:[#allocation5 + $0xa18] sm:$0xff]
    %v388 = vld [vmem:[#allocation5 + $0xa20] sm:$0xff]
    %v389 = vld [vmem:[#allocation5 + $0xa28] sm:$0xff]
    %v390 = vld [vmem:[#allocation5 + $0xa30] sm:$0xff]
    %v391 = vld [vmem:[#allocation5 + $0xa38] sm:$0xff]
    %v392 = vld [vmem:[#allocation5 + $0xa40] sm:$0xff]
    %v393 = vld [vmem:[#allocation5 + $0xa48] sm:$0xff]
    %v394 = vld [vmem:[#allocation5 + $0xa50] sm:$0xff]
    %v395 = vld [vmem:[#allocation5 + $0xa58] sm:$0xff]
    %v396 = vld [vmem:[#allocation5 + $0xa60] sm:$0xff]
    %v397 = vld [vmem:[#allocation5 + $0xa68] sm:$0xff]
    %v398 = vld [vmem:[#allocation5 + $0xa70] sm:$0xff]
    %v399 = vld [vmem:[#allocation5 + $0xa78] sm:$0xff]
    %v400 = vld [vmem:[#allocation5 + $0xa80] sm:$0xff]
    %v401 = vld [vmem:[#allocation5 + $0xa88] sm:$0xff]
    %v402 = vld [vmem:[#allocation5 + $0xa90] sm:$0xff]
    %v403 = vld [vmem:[#allocation5 + $0xa98] sm:$0xff]
    %v404 = vld [vmem:[#allocation5 + $0xaa0] sm:$0xff]
    %v405 = vld [vmem:[#allocation5 + $0xaa8] sm:$0xff]
    %v406 = vld [vmem:[#allocation5 + $0xab0] sm:$0xff]
    %v407 = vld [vmem:[#allocation5 + $0xab8] sm:$0xff]
    %v408 = vld [vmem:[#allocation5 + $0xac0] sm:$0xff]
    %v409 = vld [vmem:[#allocation5 + $0xac8] sm:$0xff]
    %v410 = vld [vmem:[#allocation5 + $0xad0] sm:$0xff]
    %v411 = vld [vmem:[#allocation5 + $0xad8] sm:$0xff]
    %v412 = vld [vmem:[#allocation5 + $0xae0] sm:$0xff]
    %v413 = vld [vmem:[#allocation5 + $0xae8] sm:$0xff]
    %v414 = vld [vmem:[#allocation5 + $0xaf0] sm:$0xff]
    %v415 = vld [vmem:[#allocation5 + $0xaf8] sm:$0xff]
    %v416 = vld [vmem:[#allocation5 + $0xb00] sm:$0xff]
    %v417 = vld [vmem:[#allocation5 + $0xb08] sm:$0xff]
    %v418 = vld [vmem:[#allocation5 + $0xb10] sm:$0xff]
    %v419 = vld [vmem:[#allocation5 + $0xb18] sm:$0xff]
    %v420 = vld [vmem:[#allocation5 + $0xb20] sm:$0xff]
    %v421 = vld [vmem:[#allocation5 + $0xb28] sm:$0xff]
    %v422 = vld [vmem:[#allocation5 + $0xb30] sm:$0xff]
    %v423 = vld [vmem:[#allocation5 + $0xb38] sm:$0xff]
    %v424 = vld [vmem:[#allocation5 + $0xb40] sm:$0xff]
    %v425 = vld [vmem:[#allocation5 + $0xb48] sm:$0xff]
    %v426 = vld [vmem:[#allocation5 + $0xb50] sm:$0xff]
    %v427 = vld [vmem:[#allocation5 + $0xb58] sm:$0xff]
    %v428 = vld [vmem:[#allocation5 + $0xb60] sm:$0xff]
    %v429 = vld [vmem:[#allocation5 + $0xb68] sm:$0xff]
    %v430 = vld [vmem:[#allocation5 + $0xb70] sm:$0xff]
    %v431 = vld [vmem:[#allocation5 + $0xb78] sm:$0xff]
    %v432 = vld [vmem:[#allocation5 + $0xb80] sm:$0xff]
    %v433 = vld [vmem:[#allocation5 + $0xb88] sm:$0xff]
    %v434 = vld [vmem:[#allocation5 + $0xb90] sm:$0xff]
    %v435 = vld [vmem:[#allocation5 + $0xb98] sm:$0xff]
    %v436 = vld [vmem:[#allocation5 + $0xba0] sm:$0xff]
    %v437 = vld [vmem:[#allocation5 + $0xba8] sm:$0xff]
    %v438 = vld [vmem:[#allocation5 + $0xbb0] sm:$0xff]
    %v439 = vld [vmem:[#allocation5 + $0xbb8] sm:$0xff]
    %v440 = vld [vmem:[#allocation5 + $0xbc0] sm:$0xff]
    %v441 = vld [vmem:[#allocation5 + $0xbc8] sm:$0xff]
    %v442 = vld [vmem:[#allocation5 + $0xbd0] sm:$0xff]
    %v443 = vld [vmem:[#allocation5 + $0xbd8] sm:$0xff]
    %v444 = vld [vmem:[#allocation5 + $0xbe0] sm:$0xff]
    %v445 = vld [vmem:[#allocation5 + $0xbe8] sm:$0xff]
    %v446 = vld [vmem:[#allocation5 + $0xbf0] sm:$0xff]
    %v447 = vld [vmem:[#allocation5 + $0xbf8] sm:$0xff]
    %v448 = vld [vmem:[#allocation5 + $0xc00] sm:$0xff]
    %v449 = vld [vmem:[#allocation5 + $0xc08] sm:$0xff]
    %v450 = vld [vmem:[#allocation5 + $0xc10] sm:$0xff]
    %v451 = vld [vmem:[#allocation5 + $0xc18] sm:$0xff]
    %v452 = vld [vmem:[#allocation5 + $0xc20] sm:$0xff]
    %v453 = vld [vmem:[#allocation5 + $0xc28] sm:$0xff]
    %v454 = vld [vmem:[#allocation5 + $0xc30] sm:$0xff]
    %v455 = vld [vmem:[#allocation5 + $0xc38] sm:$0xff]
    %v456 = vld [vmem:[#allocation5 + $0xc40] sm:$0xff]
    %v457 = vld [vmem:[#allocation5 + $0xc48] sm:$0xff]
    %v458 = vld [vmem:[#allocation5 + $0xc50] sm:$0xff]
    %v459 = vld [vmem:[#allocation5 + $0xc58] sm:$0xff]
    %v460 = vld [vmem:[#allocation5 + $0xc60] sm:$0xff]
    %v461 = vld [vmem:[#allocation5 + $0xc68] sm:$0xff]
    %v462 = vld [vmem:[#allocation5 + $0xc70] sm:$0xff]
    %v463 = vld [vmem:[#allocation5 + $0xc78] sm:$0xff]
    %v464 = vld [vmem:[#allocation5 + $0xc80] sm:$0xff]
    %v465 = vld [vmem:[#allocation5 + $0xc88] sm:$0xff]
    %v466 = vld [vmem:[#allocation5 + $0xc90] sm:$0xff]
    %v467 = vld [vmem:[#allocation5 + $0xc98] sm:$0xff]
    %v468 = vld [vmem:[#allocation5 + $0xca0] sm:$0xff]
    %v469 = vld [vmem:[#allocation5 + $0xca8] sm:$0xff]
    %v470 = vld [vmem:[#allocation5 + $0xcb0] sm:$0xff]
    %v471 = vld [vmem:[#allocation5 + $0xcb8] sm:$0xff]
    %v472 = vld [vmem:[#allocation5 + $0xcc0] sm:$0xff]
    %v473 = vld [vmem:[#allocation5 + $0xcc8] sm:$0xff]
    %v474 = vld [vmem:[#allocation5 + $0xcd0] sm:$0xff]
    %v475 = vld [vmem:[#allocation5 + $0xcd8] sm:$0xff]
    %v476 = vld [vmem:[#allocation5 + $0xce0] sm:$0xff]
    %v477 = vld [vmem:[#allocation5 + $0xce8] sm:$0xff]
    %v478 = vld [vmem:[#allocation5 + $0xcf0] sm:$0xff]
    %v479 = vld [vmem:[#allocation5 + $0xcf8] sm:$0xff]
    %v480 = vld [vmem:[#allocation5 + $0xd00] sm:$0xff]
    %v481 = vld [vmem:[#allocation5 + $0xd08] sm:$0xff]
    %v482 = vld [vmem:[#allocation5 + $0xd10] sm:$0xff]
    %v483 = vld [vmem:[#allocation5 + $0xd18] sm:$0xff]
    %v484 = vld [vmem:[#allocation5 + $0xd20] sm:$0xff]
    %v485 = vld [vmem:[#allocation5 + $0xd28] sm:$0xff]
    %v486 = vld [vmem:[#allocation5 + $0xd30] sm:$0xff]
    %v487 = vld [vmem:[#allocation5 + $0xd38] sm:$0xff]
    %v488 = vld [vmem:[#allocation5 + $0xd40] sm:$0xff]
    %v489 = vld [vmem:[#allocation5 + $0xd48] sm:$0xff]
    %v490 = vld [vmem:[#allocation5 + $0xd50] sm:$0xff]
    %v491 = vld [vmem:[#allocation5 + $0xd58] sm:$0xff]
    %v492 = vld [vmem:[#allocation5 + $0xd60] sm:$0xff]
    %v493 = vld [vmem:[#allocation5 + $0xd68] sm:$0xff]
    %v494 = vld [vmem:[#allocation5 + $0xd70] sm:$0xff]
    %v495 = vld [vmem:[#allocation5 + $0xd78] sm:$0xff]
    %v496 = vld [vmem:[#allocation5 + $0xd80] sm:$0xff]
    %v497 = vld [vmem:[#allocation5 + $0xd88] sm:$0xff]
    %v498 = vld [vmem:[#allocation5 + $0xd90] sm:$0xff]
    %v499 = vld [vmem:[#allocation5 + $0xd98] sm:$0xff]
    %v500 = vld [vmem:[#allocation5 + $0xda0] sm:$0xff]
    %v501 = vld [vmem:[#allocation5 + $0xda8] sm:$0xff]
    %v502 = vld [vmem:[#allocation5 + $0xdb0] sm:$0xff]
    %v503 = vld [vmem:[#allocation5 + $0xdb8] sm:$0xff]
    %v504 = vld [vmem:[#allocation5 + $0xdc0] sm:$0xff]
    %v505 = vld [vmem:[#allocation5 + $0xdc8] sm:$0xff]
    %v506 = vld [vmem:[#allocation5 + $0xdd0] sm:$0xff]
    %v507 = vld [vmem:[#allocation5 + $0xdd8] sm:$0xff]
    %v508 = vld [vmem:[#allocation5 + $0xde0] sm:$0xff]
    %v509 = vld [vmem:[#allocation5 + $0xde8] sm:$0xff]
    %v510 = vld [vmem:[#allocation5 + $0xdf0] sm:$0xff]
    %v511 = vld [vmem:[#allocation5 + $0xdf8] sm:$0xff]
    %v512 = vld [vmem:[#allocation5 + $0xe00] sm:$0xff]
    %v513 = vld [vmem:[#allocation5 + $0xe08] sm:$0xff]
    %v514 = vld [vmem:[#allocation5 + $0xe10] sm:$0xff]
    %v515 = vld [vmem:[#allocation5 + $0xe18] sm:$0xff]
    %v516 = vld [vmem:[#allocation5 + $0xe20] sm:$0xff]
    %v517 = vld [vmem:[#allocation5 + $0xe28] sm:$0xff]
    %v518 = vld [vmem:[#allocation5 + $0xe30] sm:$0xff]
    %v519 = vld [vmem:[#allocation5 + $0xe38] sm:$0xff]
    %v520 = vld [vmem:[#allocation5 + $0xe40] sm:$0xff]
    %v521 = vld [vmem:[#allocation5 + $0xe48] sm:$0xff]
    %v522 = vld [vmem:[#allocation5 + $0xe50] sm:$0xff]
    %v523 = vld [vmem:[#allocation5 + $0xe58] sm:$0xff]
    %v524 = vld [vmem:[#allocation5 + $0xe60] sm:$0xff]
    %v525 = vld [vmem:[#allocation5 + $0xe68] sm:$0xff]
    %v526 = vld [vmem:[#allocation5 + $0xe70] sm:$0xff]
    %v527 = vld [vmem:[#allocation5 + $0xe78] sm:$0xff]
    %v528 = vld [vmem:[#allocation5 + $0xe80] sm:$0xff]
    %v529 = vld [vmem:[#allocation5 + $0xe88] sm:$0xff]
    %v530 = vld [vmem:[#allocation5 + $0xe90] sm:$0xff]
    %v531 = vld [vmem:[#allocation5 + $0xe98] sm:$0xff]
    %v532 = vld [vmem:[#allocation5 + $0xea0] sm:$0xff]
    %v533 = vld [vmem:[#allocation5 + $0xea8] sm:$0xff]
    %v534 = vld [vmem:[#allocation5 + $0xeb0] sm:$0xff]
    %v535 = vld [vmem:[#allocation5 + $0xeb8] sm:$0xff]
    %v536 = vld [vmem:[#allocation5 + $0xec0] sm:$0xff]
    %v537 = vld [vmem:[#allocation5 + $0xec8] sm:$0xff]
    %v538 = vld [vmem:[#allocation5 + $0xed0] sm:$0xff]
    %v539 = vld [vmem:[#allocation5 + $0xed8] sm:$0xff]
    %v540 = vld [vmem:[#allocation5 + $0xee0] sm:$0xff]
    %v541 = vld [vmem:[#allocation5 + $0xee8] sm:$0xff]
    %v542 = vld [vmem:[#allocation5 + $0xef0] sm:$0xff]
    %v543 = vld [vmem:[#allocation5 + $0xef8] sm:$0xff]
    %v544 = vld [vmem:[#allocation5 + $0xf00] sm:$0xff]
    %v545 = vld [vmem:[#allocation5 + $0xf08] sm:$0xff]
    %v546 = vld [vmem:[#allocation5 + $0xf10] sm:$0xff]
    %v547 = vld [vmem:[#allocation5 + $0xf18] sm:$0xff]
    %v548 = vld [vmem:[#allocation5 + $0xf20] sm:$0xff]
    %v549 = vld [vmem:[#allocation5 + $0xf28] sm:$0xff]
    %v550 = vld [vmem:[#allocation5 + $0xf30] sm:$0xff]
    %v551 = vld [vmem:[#allocation5 + $0xf38] sm:$0xff]
    %v552 = vld [vmem:[#allocation5 + $0xf40] sm:$0xff]
    %v553 = vld [vmem:[#allocation5 + $0xf48] sm:$0xff]
    %v554 = vld [vmem:[#allocation5 + $0xf50] sm:$0xff]
    %v555 = vld [vmem:[#allocation5 + $0xf58] sm:$0xff]
    %v556 = vld [vmem:[#allocation5 + $0xf60] sm:$0xff]
    %v557 = vld [vmem:[#allocation5 + $0xf68] sm:$0xff]
    %v558 = vld [vmem:[#allocation5 + $0xf70] sm:$0xff]
    %v559 = vld [vmem:[#allocation5 + $0xf78] sm:$0xff]
    %v560 = vld [vmem:[#allocation5 + $0xf80] sm:$0xff]
    %v561 = vld [vmem:[#allocation5 + $0xf88] sm:$0xff]
    %v562 = vld [vmem:[#allocation5 + $0xf90] sm:$0xff]
    %v563 = vld [vmem:[#allocation5 + $0xf98] sm:$0xff]
    %v564 = vld [vmem:[#allocation5 + $0xfa0] sm:$0xff]
    %v565 = vld [vmem:[#allocation5 + $0xfa8] sm:$0xff]
    %v566 = vld [vmem:[#allocation5 + $0xfb0] sm:$0xff]
    %v567 = vld [vmem:[#allocation5 + $0xfb8] sm:$0xff]
    %v568 = vld [vmem:[#allocation5 + $0xfc0] sm:$0xff]
    %v569 = vld [vmem:[#allocation5 + $0xfc8] sm:$0xff]
    %v570 = vld [vmem:[#allocation5 + $0xfd0] sm:$0xff]
    %v571 = vld [vmem:[#allocation5 + $0xfd8] sm:$0xff]
    %v572 = vld [vmem:[#allocation5 + $0xfe0] sm:$0xff]
    %v573 = vld [vmem:[#allocation5 + $0xfe8] sm:$0xff]
    %v574 = vld [vmem:[#allocation5 + $0xff0] sm:$0xff]
    %v575 = vld [vmem:[#allocation5 + $0xff8] sm:$0xff]
    %v576 = vld [vmem:[#allocation5 + $0x1000] sm:$0xff]
    %v577 = vld [vmem:[#allocation5 + $0x1008] sm:$0xff]
    %v578 = vld [vmem:[#allocation5 + $0x1010] sm:$0xff]
    %v579 = vld [vmem:[#allocation5 + $0x1018] sm:$0xff]
    %v580 = vld [vmem:[#allocation5 + $0x1020] sm:$0xff]
    %v581 = vld [vmem:[#allocation5 + $0x1028] sm:$0xff]
    %v582 = vld [vmem:[#allocation5 + $0x1030] sm:$0xff]
    %v583 = vld [vmem:[#allocation5 + $0x1038] sm:$0xff]
    %v584 = vld [vmem:[#allocation5 + $0x1040] sm:$0xff]
    %v585 = vld [vmem:[#allocation5 + $0x1048] sm:$0xff]
    %v586 = vld [vmem:[#allocation5 + $0x1050] sm:$0xff]
    %v587 = vld [vmem:[#allocation5 + $0x1058] sm:$0xff]
    %v588 = vld [vmem:[#allocation5 + $0x1060] sm:$0xff]
    %v589 = vld [vmem:[#allocation5 + $0x1068] sm:$0xff]
    %v590 = vld [vmem:[#allocation5 + $0x1070] sm:$0xff]
    %v591 = vld [vmem:[#allocation5 + $0x1078] sm:$0xff]
    %v592 = vld [vmem:[#allocation5 + $0x1080] sm:$0xff]
    %v593 = vld [vmem:[#allocation5 + $0x1088] sm:$0xff]
    %v594 = vld [vmem:[#allocation5 + $0x1090] sm:$0xff]
    %v595 = vld [vmem:[#allocation5 + $0x1098] sm:$0xff]
    %v596 = vld [vmem:[#allocation5 + $0x10a0] sm:$0xff]
    %v597 = vld [vmem:[#allocation5 + $0x10a8] sm:$0xff]
    %v598 = vld [vmem:[#allocation5 + $0x10b0] sm:$0xff]
    %v599 = vld [vmem:[#allocation5 + $0x10b8] sm:$0xff]
    %v600 = vld [vmem:[#allocation5 + $0x10c0] sm:$0xff]
    %v601 = vld [vmem:[#allocation5 + $0x10c8] sm:$0xff]
    %v602 = vld [vmem:[#allocation5 + $0x10d0] sm:$0xff]
    %v603 = vld [vmem:[#allocation5 + $0x10d8] sm:$0xff]
    %v604 = vld [vmem:[#allocation5 + $0x10e0] sm:$0xff]
    %v605 = vld [vmem:[#allocation5 + $0x10e8] sm:$0xff]
    %v606 = vld [vmem:[#allocation5 + $0x10f0] sm:$0xff]
    %v607 = vld [vmem:[#allocation5 + $0x10f8] sm:$0xff]
    %v608 = vld [vmem:[#allocation5 + $0x1100] sm:$0xff]
    %v609 = vld [vmem:[#allocation5 + $0x1108] sm:$0xff]
    %v610 = vld [vmem:[#allocation5 + $0x1110] sm:$0xff]
    %v611 = vld [vmem:[#allocation5 + $0x1118] sm:$0xff]
    %v612 = vld [vmem:[#allocation5 + $0x1120] sm:$0xff]
    %v613 = vld [vmem:[#allocation5 + $0x1128] sm:$0xff]
    %v614 = vld [vmem:[#allocation5 + $0x1130] sm:$0xff]
    %v615 = vld [vmem:[#allocation5 + $0x1138] sm:$0xff]
    %v616 = vld [vmem:[#allocation5 + $0x1140] sm:$0xff]
    %v617 = vld [vmem:[#allocation5 + $0x1148] sm:$0xff]
    %v618 = vld [vmem:[#allocation5 + $0x1150] sm:$0xff]
    %v619 = vld [vmem:[#allocation5 + $0x1158] sm:$0xff]
    %v620 = vld [vmem:[#allocation5 + $0x1160] sm:$0xff]
    %v621 = vld [vmem:[#allocation5 + $0x1168] sm:$0xff]
    %v622 = vld [vmem:[#allocation5 + $0x1170] sm:$0xff]
    %v623 = vld [vmem:[#allocation5 + $0x1178] sm:$0xff]
    %v624 = vld [vmem:[#allocation5 + $0x1180] sm:$0xff]
    %v625 = vld [vmem:[#allocation5 + $0x1188] sm:$0xff]
    %v626 = vld [vmem:[#allocation5 + $0x1190] sm:$0xff]
    %v627 = vld [vmem:[#allocation5 + $0x1198] sm:$0xff]
    %v628 = vld [vmem:[#allocation5 + $0x11a0] sm:$0xff]
    %v629 = vld [vmem:[#allocation5 + $0x11a8] sm:$0xff]
    %v630 = vld [vmem:[#allocation5 + $0x11b0] sm:$0xff]
    %v631 = vld [vmem:[#allocation5 + $0x11b8] sm:$0xff]
    %v632 = vld [vmem:[#allocation5 + $0x11c0] sm:$0xff]
    %v633 = vld [vmem:[#allocation5 + $0x11c8] sm:$0xff]
    %v634 = vld [vmem:[#allocation5 + $0x11d0] sm:$0xff]
    %v635 = vld [vmem:[#allocation5 + $0x11d8] sm:$0xff]
    %v636 = vld [vmem:[#allocation5 + $0x11e0] sm:$0xff]
    %v637 = vld [vmem:[#allocation5 + $0x11e8] sm:$0xff]
    %v638 = vld [vmem:[#allocation5 + $0x11f0] sm:$0xff]
    %v639 = vld [vmem:[#allocation5 + $0x11f8] sm:$0xff]
    %v640 = vld [vmem:[#allocation5 + $0x1200] sm:$0xff]
    %v641 = vld [vmem:[#allocation5 + $0x1208] sm:$0xff]
    %v642 = vld [vmem:[#allocation5 + $0x1210] sm:$0xff]
    %v643 = vld [vmem:[#allocation5 + $0x1218] sm:$0xff]
    %v644 = vld [vmem:[#allocation5 + $0x1220] sm:$0xff]
    %v645 = vld [vmem:[#allocation5 + $0x1228] sm:$0xff]
    %v646 = vld [vmem:[#allocation5 + $0x1230] sm:$0xff]
    %v647 = vld [vmem:[#allocation5 + $0x1238] sm:$0xff]
    %v648 = vld [vmem:[#allocation5 + $0x1240] sm:$0xff]
    %v649 = vld [vmem:[#allocation5 + $0x1248] sm:$0xff]
    %v650 = vld [vmem:[#allocation5 + $0x1250] sm:$0xff]
    %v651 = vld [vmem:[#allocation5 + $0x1258] sm:$0xff]
    %v652 = vld [vmem:[#allocation5 + $0x1260] sm:$0xff]
    %v653 = vld [vmem:[#allocation5 + $0x1268] sm:$0xff]
    %v654 = vld [vmem:[#allocation5 + $0x1270] sm:$0xff]
    %v655 = vld [vmem:[#allocation5 + $0x1278] sm:$0xff]
    %v656 = vld [vmem:[#allocation5 + $0x1280] sm:$0xff]
    %v657 = vld [vmem:[#allocation5 + $0x1288] sm:$0xff]
    %v658 = vld [vmem:[#allocation5 + $0x1290] sm:$0xff]
    %v659 = vld [vmem:[#allocation5 + $0x1298] sm:$0xff]
    %v660 = vld [vmem:[#allocation5 + $0x12a0] sm:$0xff]
    %v661 = vld [vmem:[#allocation5 + $0x12a8] sm:$0xff]
    %v662 = vld [vmem:[#allocation5 + $0x12b0] sm:$0xff]
    %v663 = vld [vmem:[#allocation5 + $0x12b8] sm:$0xff]
    %v664 = vld [vmem:[#allocation5 + $0x12c0] sm:$0xff]
    %v665 = vld [vmem:[#allocation5 + $0x12c8] sm:$0xff]
    %v666 = vld [vmem:[#allocation5 + $0x12d0] sm:$0xff]
    %v667 = vld [vmem:[#allocation5 + $0x12d8] sm:$0xff]
    %v668 = vld [vmem:[#allocation5 + $0x12e0] sm:$0xff]
    %v669 = vld [vmem:[#allocation5 + $0x12e8] sm:$0xff]
    %v670 = vld [vmem:[#allocation5 + $0x12f0] sm:$0xff]
    %v671 = vld [vmem:[#allocation5 + $0x12f8] sm:$0xff]
    %v672 = vld [vmem:[#allocation5 + $0x1300] sm:$0xff]
    %v673 = vld [vmem:[#allocation5 + $0x1308] sm:$0xff]
    %v674 = vld [vmem:[#allocation5 + $0x1310] sm:$0xff]
    %v675 = vld [vmem:[#allocation5 + $0x1318] sm:$0xff]
    %v676 = vld [vmem:[#allocation5 + $0x1320] sm:$0xff]
    %v677 = vld [vmem:[#allocation5 + $0x1328] sm:$0xff]
    %v678 = vld [vmem:[#allocation5 + $0x1330] sm:$0xff]
    %v679 = vld [vmem:[#allocation5 + $0x1338] sm:$0xff]
    %v680 = vld [vmem:[#allocation5 + $0x1340] sm:$0xff]
    %v681 = vld [vmem:[#allocation5 + $0x1348] sm:$0xff]
    %v682 = vld [vmem:[#allocation5 + $0x1350] sm:$0xff]
    %v683 = vld [vmem:[#allocation5 + $0x1358] sm:$0xff]
    %v684 = vld [vmem:[#allocation5 + $0x1360] sm:$0xff]
    %v685 = vld [vmem:[#allocation5 + $0x1368] sm:$0xff]
    %v686 = vld [vmem:[#allocation5 + $0x1370] sm:$0xff]
    %v687 = vld [vmem:[#allocation5 + $0x1378] sm:$0xff]
    %v688 = vld [vmem:[#allocation5 + $0x1380] sm:$0xff]
    %v689 = vld [vmem:[#allocation5 + $0x1388] sm:$0xff]
    %v690 = vld [vmem:[#allocation5 + $0x1390] sm:$0xff]
    %v691 = vld [vmem:[#allocation5 + $0x1398] sm:$0xff]
    %v692 = vld [vmem:[#allocation5 + $0x13a0] sm:$0xff]
    %v693 = vld [vmem:[#allocation5 + $0x13a8] sm:$0xff]
    %v694 = vld [vmem:[#allocation5 + $0x13b0] sm:$0xff]
    %v695 = vld [vmem:[#allocation5 + $0x13b8] sm:$0xff]
    %v696 = vld [vmem:[#allocation5 + $0x13c0] sm:$0xff]
    %v697 = vld [vmem:[#allocation5 + $0x13c8] sm:$0xff]
    %v698 = vld [vmem:[#allocation5 + $0x13d0] sm:$0xff]
    %v699 = vld [vmem:[#allocation5 + $0x13d8] sm:$0xff]
    %v700 = vld [vmem:[#allocation5 + $0x13e0] sm:$0xff]
    %v701 = vld [vmem:[#allocation5 + $0x13e8] sm:$0xff]
    %v702 = vld [vmem:[#allocation5 + $0x13f0] sm:$0xff]
    %v703 = vld [vmem:[#allocation5 + $0x13f8] sm:$0xff]
    %v704 = vld [vmem:[#allocation5 + $0x1400] sm:$0xff]
    %v705 = vld [vmem:[#allocation5 + $0x1408] sm:$0xff]
    %v706 = vld [vmem:[#allocation5 + $0x1410] sm:$0xff]
    %v707 = vld [vmem:[#allocation5 + $0x1418] sm:$0xff]
    %v708 = vld [vmem:[#allocation5 + $0x1420] sm:$0xff]
    %v709 = vld [vmem:[#allocation5 + $0x1428] sm:$0xff]
    %v710 = vld [vmem:[#allocation5 + $0x1430] sm:$0xff]
    %v711 = vld [vmem:[#allocation5 + $0x1438] sm:$0xff]
    %v712 = vld [vmem:[#allocation5 + $0x1440] sm:$0xff]
    %v713 = vld [vmem:[#allocation5 + $0x1448] sm:$0xff]
    %v714 = vld [vmem:[#allocation5 + $0x1450] sm:$0xff]
    %v715 = vld [vmem:[#allocation5 + $0x1458] sm:$0xff]
    %v716 = vld [vmem:[#allocation5 + $0x1460] sm:$0xff]
    %v717 = vld [vmem:[#allocation5 + $0x1468] sm:$0xff]
    %v718 = vld [vmem:[#allocation5 + $0x1470] sm:$0xff]
    %v719 = vld [vmem:[#allocation5 + $0x1478] sm:$0xff]
    %v720 = vld [vmem:[#allocation5 + $0x1480] sm:$0xff]
    %v721 = vld [vmem:[#allocation5 + $0x1488] sm:$0xff]
    %v722 = vld [vmem:[#allocation5 + $0x1490] sm:$0xff]
    %v723 = vld [vmem:[#allocation5 + $0x1498] sm:$0xff]
    %v724 = vld [vmem:[#allocation5 + $0x14a0] sm:$0xff]
    %v725 = vld [vmem:[#allocation5 + $0x14a8] sm:$0xff]
    %v726 = vld [vmem:[#allocation5 + $0x14b0] sm:$0xff]
    %v727 = vld [vmem:[#allocation5 + $0x14b8] sm:$0xff]
    %v728 = vld [vmem:[#allocation5 + $0x14c0] sm:$0xff]
    %v729 = vld [vmem:[#allocation5 + $0x14c8] sm:$0xff]
    %v730 = vld [vmem:[#allocation5 + $0x14d0] sm:$0xff]
    %v731 = vld [vmem:[#allocation5 + $0x14d8] sm:$0xff]
    %v732 = vld [vmem:[#allocation5 + $0x14e0] sm:$0xff]
    %v733 = vld [vmem:[#allocation5 + $0x14e8] sm:$0xff]
    %v734 = vld [vmem:[#allocation5 + $0x14f0] sm:$0xff]
    %v735 = vld [vmem:[#allocation5 + $0x14f8] sm:$0xff]
    %v736 = vld [vmem:[#allocation5 + $0x1500] sm:$0xff]
    %v737 = vld [vmem:[#allocation5 + $0x1508] sm:$0xff]
    %v738 = vld [vmem:[#allocation5 + $0x1510] sm:$0xff]
    %v739 = vld [vmem:[#allocation5 + $0x1518] sm:$0xff]
    %v740 = vld [vmem:[#allocation5 + $0x1520] sm:$0xff]
    %v741 = vld [vmem:[#allocation5 + $0x1528] sm:$0xff]
    %v742 = vld [vmem:[#allocation5 + $0x1530] sm:$0xff]
    %v743 = vld [vmem:[#allocation5 + $0x1538] sm:$0xff]
    %v744 = vld [vmem:[#allocation5 + $0x1540] sm:$0xff]
    %v745 = vld [vmem:[#allocation5 + $0x1548] sm:$0xff]
    %v746 = vld [vmem:[#allocation5 + $0x1550] sm:$0xff]
    %v747 = vld [vmem:[#allocation5 + $0x1558] sm:$0xff]
    %v748 = vld [vmem:[#allocation5 + $0x1560] sm:$0xff]
    %v749 = vld [vmem:[#allocation5 + $0x1568] sm:$0xff]
    %v750 = vld [vmem:[#allocation5 + $0x1570] sm:$0xff]
    %v751 = vld [vmem:[#allocation5 + $0x1578] sm:$0xff]
    %v752 = vld [vmem:[#allocation5 + $0x1580] sm:$0xff]
    %v753 = vld [vmem:[#allocation5 + $0x1588] sm:$0xff]
    %v754 = vld [vmem:[#allocation5 + $0x1590] sm:$0xff]
    %v755 = vld [vmem:[#allocation5 + $0x1598] sm:$0xff]
    %v756 = vld [vmem:[#allocation5 + $0x15a0] sm:$0xff]
    %v757 = vld [vmem:[#allocation5 + $0x15a8] sm:$0xff]
    %v758 = vld [vmem:[#allocation5 + $0x15b0] sm:$0xff]
    %v759 = vld [vmem:[#allocation5 + $0x15b8] sm:$0xff]
    %v760 = vld [vmem:[#allocation5 + $0x15c0] sm:$0xff]
    %v761 = vld [vmem:[#allocation5 + $0x15c8] sm:$0xff]
    %v762 = vld [vmem:[#allocation5 + $0x15d0] sm:$0xff]
    %v763 = vld [vmem:[#allocation5 + $0x15d8] sm:$0xff]
    %v764 = vld [vmem:[#allocation5 + $0x15e0] sm:$0xff]
    %v765 = vld [vmem:[#allocation5 + $0x15e8] sm:$0xff]
    %v766 = vld [vmem:[#allocation5 + $0x15f0] sm:$0xff]
    %v767 = vld [vmem:[#allocation5 + $0x15f8] sm:$0xff]
    %v768 = vld [vmem:[#allocation5 + $0x1600] sm:$0xff]
    %v769 = vld [vmem:[#allocation5 + $0x1608] sm:$0xff]
    %v770 = vld [vmem:[#allocation5 + $0x1610] sm:$0xff]
    %v771 = vld [vmem:[#allocation5 + $0x1618] sm:$0xff]
    %v772 = vld [vmem:[#allocation5 + $0x1620] sm:$0xff]
    %v773 = vld [vmem:[#allocation5 + $0x1628] sm:$0xff]
    %v774 = vld [vmem:[#allocation5 + $0x1630] sm:$0xff]
    %v775 = vld [vmem:[#allocation5 + $0x1638] sm:$0xff]
    %v776 = vld [vmem:[#allocation5 + $0x1640] sm:$0xff]
    %v777 = vld [vmem:[#allocation5 + $0x1648] sm:$0xff]
    %v778 = vld [vmem:[#allocation5 + $0x1650] sm:$0xff]
    %v779 = vld [vmem:[#allocation5 + $0x1658] sm:$0xff]
    %v780 = vld [vmem:[#allocation5 + $0x1660] sm:$0xff]
    %v781 = vld [vmem:[#allocation5 + $0x1668] sm:$0xff]
    %v782 = vld [vmem:[#allocation5 + $0x1670] sm:$0xff]
    %v783 = vld [vmem:[#allocation5 + $0x1678] sm:$0xff]
    %v784 = vld [vmem:[#allocation5 + $0x1680] sm:$0xff]
    %v785 = vld [vmem:[#allocation5 + $0x1688] sm:$0xff]
    %v786 = vld [vmem:[#allocation5 + $0x1690] sm:$0xff]
    %v787 = vld [vmem:[#allocation5 + $0x1698] sm:$0xff]
    %v788 = vld [vmem:[#allocation5 + $0x16a0] sm:$0xff]
    %v789 = vld [vmem:[#allocation5 + $0x16a8] sm:$0xff]
    %v790 = vld [vmem:[#allocation5 + $0x16b0] sm:$0xff]
    %v791 = vld [vmem:[#allocation5 + $0x16b8] sm:$0xff]
    %v792 = vld [vmem:[#allocation5 + $0x16c0] sm:$0xff]
    %v793 = vld [vmem:[#allocation5 + $0x16c8] sm:$0xff]
    %v794 = vld [vmem:[#allocation5 + $0x16d0] sm:$0xff]
    %v795 = vld [vmem:[#allocation5 + $0x16d8] sm:$0xff]
    %v796 = vld [vmem:[#allocation5 + $0x16e0] sm:$0xff]
    %v797 = vld [vmem:[#allocation5 + $0x16e8] sm:$0xff]
    %v798 = vld [vmem:[#allocation5 + $0x16f0] sm:$0xff]
    %v799 = vld [vmem:[#allocation5 + $0x16f8] sm:$0xff]
    %v800 = vld [vmem:[#allocation5 + $0x1700] sm:$0xff]
    %v801 = vld [vmem:[#allocation5 + $0x1708] sm:$0xff]
    %v802 = vld [vmem:[#allocation5 + $0x1710] sm:$0xff]
    %v803 = vld [vmem:[#allocation5 + $0x1718] sm:$0xff]
    %v804 = vld [vmem:[#allocation5 + $0x1720] sm:$0xff]
    %v805 = vld [vmem:[#allocation5 + $0x1728] sm:$0xff]
    %v806 = vld [vmem:[#allocation5 + $0x1730] sm:$0xff]
    %v807 = vld [vmem:[#allocation5 + $0x1738] sm:$0xff]
    %v808 = vld [vmem:[#allocation5 + $0x1740] sm:$0xff]
    %v809 = vld [vmem:[#allocation5 + $0x1748] sm:$0xff]
    %v810 = vld [vmem:[#allocation5 + $0x1750] sm:$0xff]
    %v811 = vld [vmem:[#allocation5 + $0x1758] sm:$0xff]
    %v812 = vld [vmem:[#allocation5 + $0x1760] sm:$0xff]
    %v813 = vld [vmem:[#allocation5 + $0x1768] sm:$0xff]
    %v814 = vld [vmem:[#allocation5 + $0x1770] sm:$0xff]
    %v815 = vld [vmem:[#allocation5 + $0x1778] sm:$0xff]
    %v816 = vld [vmem:[#allocation5 + $0x1780] sm:$0xff]
    %v817 = vld [vmem:[#allocation5 + $0x1788] sm:$0xff]
    %v818 = vld [vmem:[#allocation5 + $0x1790] sm:$0xff]
    %v819 = vld [vmem:[#allocation5 + $0x1798] sm:$0xff]
    %v820 = vld [vmem:[#allocation5 + $0x17a0] sm:$0xff]
    %v821 = vld [vmem:[#allocation5 + $0x17a8] sm:$0xff]
    %v822 = vld [vmem:[#allocation5 + $0x17b0] sm:$0xff]
    %v823 = vld [vmem:[#allocation5 + $0x17b8] sm:$0xff]
    %v824 = vld [vmem:[#allocation5 + $0x17c0] sm:$0xff]
    %v825 = vld [vmem:[#allocation5 + $0x17c8] sm:$0xff]
    %v826 = vld [vmem:[#allocation5 + $0x17d0] sm:$0xff]
    %v827 = vld [vmem:[#allocation5 + $0x17d8] sm:$0xff]
    %v828 = vld [vmem:[#allocation5 + $0x17e0] sm:$0xff]
    %v829 = vld [vmem:[#allocation5 + $0x17e8] sm:$0xff]
    %v830 = vld [vmem:[#allocation5 + $0x17f0] sm:$0xff]
    %v831 = vld [vmem:[#allocation5 + $0x17f8] sm:$0xff]
    %v832 = vld [vmem:[#allocation5 + $0x1800] sm:$0xff]
    %v833 = vld [vmem:[#allocation5 + $0x1808] sm:$0xff]
    %v834 = vld [vmem:[#allocation5 + $0x1810] sm:$0xff]
    %v835 = vld [vmem:[#allocation5 + $0x1818] sm:$0xff]
    %v836 = vld [vmem:[#allocation5 + $0x1820] sm:$0xff]
    %v837 = vld [vmem:[#allocation5 + $0x1828] sm:$0xff]
    %v838 = vld [vmem:[#allocation5 + $0x1830] sm:$0xff]
    %v839 = vld [vmem:[#allocation5 + $0x1838] sm:$0xff]
    %v840 = vld [vmem:[#allocation5 + $0x1840] sm:$0xff]
    %v841 = vld [vmem:[#allocation5 + $0x1848] sm:$0xff]
    %v842 = vld [vmem:[#allocation5 + $0x1850] sm:$0xff]
    %v843 = vld [vmem:[#allocation5 + $0x1858] sm:$0xff]
    %v844 = vld [vmem:[#allocation5 + $0x1860] sm:$0xff]
    %v845 = vld [vmem:[#allocation5 + $0x1868] sm:$0xff]
    %v846 = vld [vmem:[#allocation5 + $0x1870] sm:$0xff]
    %v847 = vld [vmem:[#allocation5 + $0x1878] sm:$0xff]
    %v848 = vld [vmem:[#allocation5 + $0x1880] sm:$0xff]
    %v849 = vld [vmem:[#allocation5 + $0x1888] sm:$0xff]
    %v850 = vld [vmem:[#allocation5 + $0x1890] sm:$0xff]
    %v851 = vld [vmem:[#allocation5 + $0x1898] sm:$0xff]
    %v852 = vld [vmem:[#allocation5 + $0x18a0] sm:$0xff]
    %v853 = vld [vmem:[#allocation5 + $0x18a8] sm:$0xff]
    %v854 = vld [vmem:[#allocation5 + $0x18b0] sm:$0xff]
    %v855 = vld [vmem:[#allocation5 + $0x18b8] sm:$0xff]
    %v856 = vld [vmem:[#allocation5 + $0x18c0] sm:$0xff]
    %v857 = vld [vmem:[#allocation5 + $0x18c8] sm:$0xff]
    %v858 = vld [vmem:[#allocation5 + $0x18d0] sm:$0xff]
    %v859 = vld [vmem:[#allocation5 + $0x18d8] sm:$0xff]
    %v860 = vld [vmem:[#allocation5 + $0x18e0] sm:$0xff]
    %v861 = vld [vmem:[#allocation5 + $0x18e8] sm:$0xff]
    %v862 = vld [vmem:[#allocation5 + $0x18f0] sm:$0xff]
    %v863 = vld [vmem:[#allocation5 + $0x18f8] sm:$0xff]
    %v864 = vld [vmem:[#allocation5 + $0x1900] sm:$0xff]
    %v865 = vld [vmem:[#allocation5 + $0x1908] sm:$0xff]
    %v866 = vld [vmem:[#allocation5 + $0x1910] sm:$0xff]
    %v867 = vld [vmem:[#allocation5 + $0x1918] sm:$0xff]
    %v868 = vld [vmem:[#allocation5 + $0x1920] sm:$0xff]
    %v869 = vld [vmem:[#allocation5 + $0x1928] sm:$0xff]
    %v870 = vld [vmem:[#allocation5 + $0x1930] sm:$0xff]
    %v871 = vld [vmem:[#allocation5 + $0x1938] sm:$0xff]
    %v872 = vld [vmem:[#allocation5 + $0x1940] sm:$0xff]
    %v873 = vld [vmem:[#allocation5 + $0x1948] sm:$0xff]
    %v874 = vld [vmem:[#allocation5 + $0x1950] sm:$0xff]
    %v875 = vld [vmem:[#allocation5 + $0x1958] sm:$0xff]
    %v876 = vld [vmem:[#allocation5 + $0x1960] sm:$0xff]
    %v877 = vld [vmem:[#allocation5 + $0x1968] sm:$0xff]
    %v878 = vld [vmem:[#allocation5 + $0x1970] sm:$0xff]
    %v879 = vld [vmem:[#allocation5 + $0x1978] sm:$0xff]
    %v880 = vld [vmem:[#allocation5 + $0x1980] sm:$0xff]
    %v881 = vld [vmem:[#allocation5 + $0x1988] sm:$0xff]
    %v882 = vld [vmem:[#allocation5 + $0x1990] sm:$0xff]
    %v883 = vld [vmem:[#allocation5 + $0x1998] sm:$0xff]
    %v884 = vld [vmem:[#allocation5 + $0x19a0] sm:$0xff]
    %v885 = vld [vmem:[#allocation5 + $0x19a8] sm:$0xff]
    %v886 = vld [vmem:[#allocation5 + $0x19b0] sm:$0xff]
    %v887 = vld [vmem:[#allocation5 + $0x19b8] sm:$0xff]
    %v888 = vld [vmem:[#allocation5 + $0x19c0] sm:$0xff]
    %v889 = vld [vmem:[#allocation5 + $0x19c8] sm:$0xff]
    %v890 = vld [vmem:[#allocation5 + $0x19d0] sm:$0xff]
    %v891 = vld [vmem:[#allocation5 + $0x19d8] sm:$0xff]
    %v892 = vld [vmem:[#allocation5 + $0x19e0] sm:$0xff]
    %v893 = vld [vmem:[#allocation5 + $0x19e8] sm:$0xff]
    %v894 = vld [vmem:[#allocation5 + $0x19f0] sm:$0xff]
    %v895 = vld [vmem:[#allocation5 + $0x19f8] sm:$0xff]
    %v896 = vld [vmem:[#allocation5 + $0x1a00] sm:$0xff]
    %v897 = vld [vmem:[#allocation5 + $0x1a08] sm:$0xff]
    %v898 = vld [vmem:[#allocation5 + $0x1a10] sm:$0xff]
    %v899 = vld [vmem:[#allocation5 + $0x1a18] sm:$0xff]
    %v900 = vld [vmem:[#allocation5 + $0x1a20] sm:$0xff]
    %v901 = vld [vmem:[#allocation5 + $0x1a28] sm:$0xff]
    %v902 = vld [vmem:[#allocation5 + $0x1a30] sm:$0xff]
    %v903 = vld [vmem:[#allocation5 + $0x1a38] sm:$0xff]
    %v904 = vld [vmem:[#allocation5 + $0x1a40] sm:$0xff]
    %v905 = vld [vmem:[#allocation5 + $0x1a48] sm:$0xff]
    %v906 = vld [vmem:[#allocation5 + $0x1a50] sm:$0xff]
    %v907 = vld [vmem:[#allocation5 + $0x1a58] sm:$0xff]
    %v908 = vld [vmem:[#allocation5 + $0x1a60] sm:$0xff]
    %v909 = vld [vmem:[#allocation5 + $0x1a68] sm:$0xff]
    %v910 = vld [vmem:[#allocation5 + $0x1a70] sm:$0xff]
    %v911 = vld [vmem:[#allocation5 + $0x1a78] sm:$0xff]
    %v912 = vld [vmem:[#allocation5 + $0x1a80] sm:$0xff]
    %v913 = vld [vmem:[#allocation5 + $0x1a88] sm:$0xff]
    %v914 = vld [vmem:[#allocation5 + $0x1a90] sm:$0xff]
    %v915 = vld [vmem:[#allocation5 + $0x1a98] sm:$0xff]
    %v916 = vld [vmem:[#allocation5 + $0x1aa0] sm:$0xff]
    %v917 = vld [vmem:[#allocation5 + $0x1aa8] sm:$0xff]
    %v918 = vld [vmem:[#allocation5 + $0x1ab0] sm:$0xff]
    %v919 = vld [vmem:[#allocation5 + $0x1ab8] sm:$0xff]
    %v920 = vld [vmem:[#allocation5 + $0x1ac0] sm:$0xff]
    %v921 = vld [vmem:[#allocation5 + $0x1ac8] sm:$0xff]
    %v922 = vld [vmem:[#allocation5 + $0x1ad0] sm:$0xff]
    %v923 = vld [vmem:[#allocation5 + $0x1ad8] sm:$0xff]
    %v924 = vld [vmem:[#allocation5 + $0x1ae0] sm:$0xff]
    %v925 = vld [vmem:[#allocation5 + $0x1ae8] sm:$0xff]
    %v926 = vld [vmem:[#allocation5 + $0x1af0] sm:$0xff]
    %v927 = vld [vmem:[#allocation5 + $0x1af8] sm:$0xff]
    %v928 = vld [vmem:[#allocation5 + $0x1b00] sm:$0xff]
    %v929 = vld [vmem:[#allocation5 + $0x1b08] sm:$0xff]
    %v930 = vld [vmem:[#allocation5 + $0x1b10] sm:$0xff]
    %v931 = vld [vmem:[#allocation5 + $0x1b18] sm:$0xff]
    %v932 = vld [vmem:[#allocation5 + $0x1b20] sm:$0xff]
    %v933 = vld [vmem:[#allocation5 + $0x1b28] sm:$0xff]
    %v934 = vld [vmem:[#allocation5 + $0x1b30] sm:$0xff]
    %v935 = vld [vmem:[#allocation5 + $0x1b38] sm:$0xff]
    %v936 = vld [vmem:[#allocation5 + $0x1b40] sm:$0xff]
    %v937 = vld [vmem:[#allocation5 + $0x1b48] sm:$0xff]
    %v938 = vld [vmem:[#allocation5 + $0x1b50] sm:$0xff]
    %v939 = vld [vmem:[#allocation5 + $0x1b58] sm:$0xff]
    %v940 = vld [vmem:[#allocation5 + $0x1b60] sm:$0xff]
    %v941 = vld [vmem:[#allocation5 + $0x1b68] sm:$0xff]
    %v942 = vld [vmem:[#allocation5 + $0x1b70] sm:$0xff]
    %v943 = vld [vmem:[#allocation5 + $0x1b78] sm:$0xff]
    %v944 = vld [vmem:[#allocation5 + $0x1b80] sm:$0xff]
    %v945 = vld [vmem:[#allocation5 + $0x1b88] sm:$0xff]
    %v946 = vld [vmem:[#allocation5 + $0x1b90] sm:$0xff]
    %v947 = vld [vmem:[#allocation5 + $0x1b98] sm:$0xff]
    %v948 = vld [vmem:[#allocation5 + $0x1ba0] sm:$0xff]
    %v949 = vld [vmem:[#allocation5 + $0x1ba8] sm:$0xff]
    %v950 = vld [vmem:[#allocation5 + $0x1bb0] sm:$0xff]
    %v951 = vld [vmem:[#allocation5 + $0x1bb8] sm:$0xff]
    %v952 = vld [vmem:[#allocation5 + $0x1bc0] sm:$0xff]
    %v953 = vld [vmem:[#allocation5 + $0x1bc8] sm:$0xff]
    %v954 = vld [vmem:[#allocation5 + $0x1bd0] sm:$0xff]
    %v955 = vld [vmem:[#allocation5 + $0x1bd8] sm:$0xff]
    %v956 = vld [vmem:[#allocation5 + $0x1be0] sm:$0xff]
    %v957 = vld [vmem:[#allocation5 + $0x1be8] sm:$0xff]
    %v958 = vld [vmem:[#allocation5 + $0x1bf0] sm:$0xff]
    %v959 = vld [vmem:[#allocation5 + $0x1bf8] sm:$0xff]
    %v960 = vld [vmem:[#allocation5 + $0x1c00] sm:$0xff]
    %v961 = vld [vmem:[#allocation5 + $0x1c08] sm:$0xff]
    %v962 = vld [vmem:[#allocation5 + $0x1c10] sm:$0xff]
    %v963 = vld [vmem:[#allocation5 + $0x1c18] sm:$0xff]
    %v964 = vld [vmem:[#allocation5 + $0x1c20] sm:$0xff]
    %v965 = vld [vmem:[#allocation5 + $0x1c28] sm:$0xff]
    %v966 = vld [vmem:[#allocation5 + $0x1c30] sm:$0xff]
    %v967 = vld [vmem:[#allocation5 + $0x1c38] sm:$0xff]
    %v968 = vld [vmem:[#allocation5 + $0x1c40] sm:$0xff]
    %v969 = vld [vmem:[#allocation5 + $0x1c48] sm:$0xff]
    %v970 = vld [vmem:[#allocation5 + $0x1c50] sm:$0xff]
    %v971 = vld [vmem:[#allocation5 + $0x1c58] sm:$0xff]
    %v972 = vld [vmem:[#allocation5 + $0x1c60] sm:$0xff]
    %v973 = vld [vmem:[#allocation5 + $0x1c68] sm:$0xff]
    %v974 = vld [vmem:[#allocation5 + $0x1c70] sm:$0xff]
    %v975 = vld [vmem:[#allocation5 + $0x1c78] sm:$0xff]
    %v976 = vld [vmem:[#allocation5 + $0x1c80] sm:$0xff]
    %v977 = vld [vmem:[#allocation5 + $0x1c88] sm:$0xff]
    %v978 = vld [vmem:[#allocation5 + $0x1c90] sm:$0xff]
    %v979 = vld [vmem:[#allocation5 + $0x1c98] sm:$0xff]
    %v980 = vld [vmem:[#allocation5 + $0x1ca0] sm:$0xff]
    %v981 = vld [vmem:[#allocation5 + $0x1ca8] sm:$0xff]
    %v982 = vld [vmem:[#allocation5 + $0x1cb0] sm:$0xff]
    %v983 = vld [vmem:[#allocation5 + $0x1cb8] sm:$0xff]
    %v984 = vld [vmem:[#allocation5 + $0x1cc0] sm:$0xff]
    %v985 = vld [vmem:[#allocation5 + $0x1cc8] sm:$0xff]
    %v986 = vld [vmem:[#allocation5 + $0x1cd0] sm:$0xff]
    %v987 = vld [vmem:[#allocation5 + $0x1cd8] sm:$0xff]
    %v988 = vld [vmem:[#allocation5 + $0x1ce0] sm:$0xff]
    %v989 = vld [vmem:[#allocation5 + $0x1ce8] sm:$0xff]
    %v990 = vld [vmem:[#allocation5 + $0x1cf0] sm:$0xff]
    %v991 = vld [vmem:[#allocation5 + $0x1cf8] sm:$0xff]
    %v992 = vld [vmem:[#allocation5 + $0x1d00] sm:$0xff]
    %v993 = vld [vmem:[#allocation5 + $0x1d08] sm:$0xff]
    %v994 = vld [vmem:[#allocation5 + $0x1d10] sm:$0xff]
    %v995 = vld [vmem:[#allocation5 + $0x1d18] sm:$0xff]
    %v996 = vld [vmem:[#allocation5 + $0x1d20] sm:$0xff]
    %v997 = vld [vmem:[#allocation5 + $0x1d28] sm:$0xff]
    %v998 = vld [vmem:[#allocation5 + $0x1d30] sm:$0xff]
    %v999 = vld [vmem:[#allocation5 + $0x1d38] sm:$0xff]
    %v1000 = vld [vmem:[#allocation5 + $0x1d40] sm:$0xff]
    %v1001 = vld [vmem:[#allocation5 + $0x1d48] sm:$0xff]
    %v1002 = vld [vmem:[#allocation5 + $0x1d50] sm:$0xff]
    %v1003 = vld [vmem:[#allocation5 + $0x1d58] sm:$0xff]
    %v1004 = vld [vmem:[#allocation5 + $0x1d60] sm:$0xff]
    %v1005 = vld [vmem:[#allocation5 + $0x1d68] sm:$0xff]
    %v1006 = vld [vmem:[#allocation5 + $0x1d70] sm:$0xff]
    %v1007 = vld [vmem:[#allocation5 + $0x1d78] sm:$0xff]
    %v1008 = vld [vmem:[#allocation5 + $0x1d80] sm:$0xff]
    %v1009 = vld [vmem:[#allocation5 + $0x1d88] sm:$0xff]
    %v1010 = vld [vmem:[#allocation5 + $0x1d90] sm:$0xff]
    %v1011 = vld [vmem:[#allocation5 + $0x1d98] sm:$0xff]
    %v1012 = vld [vmem:[#allocation5 + $0x1da0] sm:$0xff]
    %v1013 = vld [vmem:[#allocation5 + $0x1da8] sm:$0xff]
    %v1014 = vld [vmem:[#allocation5 + $0x1db0] sm:$0xff]
    %v1015 = vld [vmem:[#allocation5 + $0x1db8] sm:$0xff]
    %v1016 = vld [vmem:[#allocation5 + $0x1dc0] sm:$0xff]
    %v1017 = vld [vmem:[#allocation5 + $0x1dc8] sm:$0xff]
    %v1018 = vld [vmem:[#allocation5 + $0x1dd0] sm:$0xff]
    %v1019 = vld [vmem:[#allocation5 + $0x1dd8] sm:$0xff]
    %v1020 = vld [vmem:[#allocation5 + $0x1de0] sm:$0xff]
    %v1021 = vld [vmem:[#allocation5 + $0x1de8] sm:$0xff]
    %v1022 = vld [vmem:[#allocation5 + $0x1df0] sm:$0xff]
    %v1023 = vld [vmem:[#allocation5 + $0x1df8] sm:$0xff]
    %v1024 = vld [vmem:[#allocation5 + $0x1e00] sm:$0xff]
    %v1025 = vld [vmem:[#allocation5 + $0x1e08] sm:$0xff]
    %v1026 = vld [vmem:[#allocation5 + $0x1e10] sm:$0xff]
    %v1027 = vld [vmem:[#allocation5 + $0x1e18] sm:$0xff]
    %v1028 = vld [vmem:[#allocation5 + $0x1e20] sm:$0xff]
    %v1029 = vld [vmem:[#allocation5 + $0x1e28] sm:$0xff]
    %v1030 = vld [vmem:[#allocation5 + $0x1e30] sm:$0xff]
    %v1031 = vld [vmem:[#allocation5 + $0x1e38] sm:$0xff]
    %v1032 = vld [vmem:[#allocation5 + $0x1e40] sm:$0xff]
    %v1033 = vld [vmem:[#allocation5 + $0x1e48] sm:$0xff]
    %v1034 = vld [vmem:[#allocation5 + $0x1e50] sm:$0xff]
    %v1035 = vld [vmem:[#allocation5 + $0x1e58] sm:$0xff]
    %v1036 = vld [vmem:[#allocation5 + $0x1e60] sm:$0xff]
    %v1037 = vld [vmem:[#allocation5 + $0x1e68] sm:$0xff]
    %v1038 = vld [vmem:[#allocation5 + $0x1e70] sm:$0xff]
    %v1039 = vld [vmem:[#allocation5 + $0x1e78] sm:$0xff]
    %v1040 = vld [vmem:[#allocation5 + $0x1e80] sm:$0xff]
    %v1041 = vld [vmem:[#allocation5 + $0x1e88] sm:$0xff]
    %v1042 = vld [vmem:[#allocation5 + $0x1e90] sm:$0xff]
    %v1043 = vld [vmem:[#allocation5 + $0x1e98] sm:$0xff]
    %v1044 = vld [vmem:[#allocation5 + $0x1ea0] sm:$0xff]
    %v1045 = vld [vmem:[#allocation5 + $0x1ea8] sm:$0xff]
    %v1046 = vld [vmem:[#allocation5 + $0x1eb0] sm:$0xff]
    %v1047 = vld [vmem:[#allocation5 + $0x1eb8] sm:$0xff]
    %v1048 = vld [vmem:[#allocation5 + $0x1ec0] sm:$0xff]
    %v1049 = vld [vmem:[#allocation5 + $0x1ec8] sm:$0xff]
    %v1050 = vld [vmem:[#allocation5 + $0x1ed0] sm:$0xff]
    %v1051 = vld [vmem:[#allocation5 + $0x1ed8] sm:$0xff]
    %v1052 = vld [vmem:[#allocation5 + $0x1ee0] sm:$0xff]
    %v1053 = vld [vmem:[#allocation5 + $0x1ee8] sm:$0xff]
    %v1054 = vld [vmem:[#allocation5 + $0x1ef0] sm:$0xff]
    %v1055 = vld [vmem:[#allocation5 + $0x1ef8] sm:$0xff]
    %v1056 = vld [vmem:[#allocation5 + $0x1f00] sm:$0xff]
    %v1057 = vld [vmem:[#allocation5 + $0x1f08] sm:$0xff]
    %v1058 = vld [vmem:[#allocation5 + $0x1f10] sm:$0xff]
    %v1059 = vld [vmem:[#allocation5 + $0x1f18] sm:$0xff]
    %v1060 = vld [vmem:[#allocation5 + $0x1f20] sm:$0xff]
    %v1061 = vld [vmem:[#allocation5 + $0x1f28] sm:$0xff]
    %v1062 = vld [vmem:[#allocation5 + $0x1f30] sm:$0xff]
    %v1063 = vld [vmem:[#allocation5 + $0x1f38] sm:$0xff]
    %v1064 = vld [vmem:[#allocation5 + $0x1f40] sm:$0xff]
    %v1065 = vld [vmem:[#allocation5 + $0x1f48] sm:$0xff]
    %v1066 = vld [vmem:[#allocation5 + $0x1f50] sm:$0xff]
    %v1067 = vld [vmem:[#allocation5 + $0x1f58] sm:$0xff]
    %v1068 = vld [vmem:[#allocation5 + $0x1f60] sm:$0xff]
    %v1069 = vld [vmem:[#allocation5 + $0x1f68] sm:$0xff]
    %v1070 = vld [vmem:[#allocation5 + $0x1f70] sm:$0xff]
    %v1071 = vld [vmem:[#allocation5 + $0x1f78] sm:$0xff]
    %v1072 = vld [vmem:[#allocation5 + $0x1f80] sm:$0xff]
    %v1073 = vld [vmem:[#allocation5 + $0x1f88] sm:$0xff]
    %v1074 = vld [vmem:[#allocation5 + $0x1f90] sm:$0xff]
    %v1075 = vld [vmem:[#allocation5 + $0x1f98] sm:$0xff]
    %v1076 = vld [vmem:[#allocation5 + $0x1fa0] sm:$0xff]
    %v1077 = vld [vmem:[#allocation5 + $0x1fa8] sm:$0xff]
    %v1078 = vld [vmem:[#allocation5 + $0x1fb0] sm:$0xff]
    %v1079 = vld [vmem:[#allocation5 + $0x1fb8] sm:$0xff]
    %v1080 = vld [vmem:[#allocation5 + $0x1fc0] sm:$0xff]
    %v1081 = vld [vmem:[#allocation5 + $0x1fc8] sm:$0xff]
    %v1082 = vld [vmem:[#allocation5 + $0x1fd0] sm:$0xff]
    %v1083 = vld [vmem:[#allocation5 + $0x1fd8] sm:$0xff]
    %v1084 = vld [vmem:[#allocation5 + $0x1fe0] sm:$0xff]
    %v1085 = vld [vmem:[#allocation5 + $0x1fe8] sm:$0xff]
    %v1086 = vld [vmem:[#allocation5 + $0x1ff0] sm:$0xff]
    %v1087 = vld [vmem:[#allocation5 + $0x1ff8] sm:$0xff]
    %v1088 = vld [vmem:[#allocation7] sm:$0xff]
    %v1090 = vlaneseq
    %v1091 = vshrl.u32 %v1090, 7
    %v1092 = vsub.s32 0, %v1091
    %v1093 = vrot.slane %v1088, %v1092
    %v1094 = vlaneseq
    %v1095 = vshrl.u32 %v1094, 7
    %v1096 = vsub.s32 1, %v1095
    %v1097 = vrot.slane %v1088, %v1096
    %v1098 = vlaneseq
    %v1099 = vshrl.u32 %v1098, 7
    %v1100 = vsub.s32 2, %v1099
    %v1101 = vrot.slane %v1088, %v1100
    %v1102 = vlaneseq
    %v1103 = vshrl.u32 %v1102, 7
    %v1104 = vsub.s32 3, %v1103
    %v1105 = vrot.slane %v1088, %v1104
    %v1106 = vlaneseq
    %v1107 = vshrl.u32 %v1106, 7
    %v1108 = vsub.s32 4, %v1107
    %v1109 = vrot.slane %v1088, %v1108
    %v1110 = vlaneseq
    %v1111 = vshrl.u32 %v1110, 7
    %v1112 = vsub.s32 5, %v1111
    %v1113 = vrot.slane %v1088, %v1112
    %v1114 = vlaneseq
    %v1115 = vshrl.u32 %v1114, 7
    %v1116 = vsub.s32 6, %v1115
    %v1117 = vrot.slane %v1088, %v1116
    %v1118 = vlaneseq
    %v1119 = vshrl.u32 %v1118, 7
    %v1120 = vsub.s32 7, %v1119
    %v1121 = vrot.slane %v1088, %v1120
    %1130 = vmatprep.subr.mxu0 %v185
    %1131 = vmatpush1.msra.mxu0 %v184
    %1132 = vmatprep.subr.mxu0 %v177
    %1133 = vmatpush1.msra.mxu0 %v176
    %1134 = vmatprep.subr.mxu0 %v169
    %1135 = vmatpush1.msra.mxu0 %v168
    %1136 = vmatprep.subr.mxu0 %v161
    %1137 = vmatpush1.msra.mxu0 %v160
    %1138 = vmatprep.subr.mxu0 %v153
    %1139 = vmatpush1.msra.mxu0 %v152
    %1140 = vmatprep.subr.mxu0 %v145
    %1141 = vmatpush1.msra.mxu0 %v144
    %1142 = vmatprep.subr.mxu0 %v137
    %1143 = vmatpush1.msra.mxu0 %v136
    %1144 = vmatprep.subr.mxu0 %v129
    %1145 = vmatpush1.msra.mxu0 %v128
    %1146 = vmatprep.subr.mxu0 %v121
    %1147 = vmatpush1.msra.mxu0 %v120
    %1148 = vmatprep.subr.mxu0 %v113
    %1149 = vmatpush1.msra.mxu0 %v112
    %1150 = vmatprep.subr.mxu0 %v105
    %1151 = vmatpush1.msra.mxu0 %v104
    %1152 = vmatprep.subr.mxu0 %v97
    %1153 = vmatpush1.msra.mxu0 %v96
    %1154 = vmatprep.subr.mxu0 %v89
    %1155 = vmatpush1.msra.mxu0 %v88
    %1156 = vmatprep.subr.mxu0 %v81
    %1157 = vmatpush1.msra.mxu0 %v80
    %1158 = vmatprep.subr.mxu0 %v73
    %1159 = vmatpush1.msra.mxu0 %v72
    %1160 = vmatprep.subr.mxu0 %v65
    %1161 = vmatpush1.msra.mxu0 %v64
    %1162 = vmatprep.subr.mxu0 %v313
    %1163 = vmatpush2.msra.mxu0 %v312
    %1164 = vmatprep.subr.mxu0 %v305
    %1165 = vmatpush2.msra.mxu0 %v304
    %1166 = vmatprep.subr.mxu0 %v297
    %1167 = vmatpush2.msra.mxu0 %v296
    %1168 = vmatprep.subr.mxu0 %v289
    %1169 = vmatpush2.msra.mxu0 %v288
    %1170 = vmatprep.subr.mxu0 %v281
    %1171 = vmatpush2.msra.mxu0 %v280
    %1172 = vmatprep.subr.mxu0 %v273
    %1173 = vmatpush2.msra.mxu0 %v272
    %1174 = vmatprep.subr.mxu0 %v265
    %1175 = vmatpush2.msra.mxu0 %v264
    %1176 = vmatprep.subr.mxu0 %v257
    %1177 = vmatpush2.msra.mxu0 %v256
    %1178 = vmatprep.subr.mxu0 %v249
    %1179 = vmatpush2.msra.mxu0 %v248
    %1180 = vmatprep.subr.mxu0 %v241
    %1181 = vmatpush2.msra.mxu0 %v240
    %1182 = vmatprep.subr.mxu0 %v233
    %1183 = vmatpush2.msra.mxu0 %v232
    %1184 = vmatprep.subr.mxu0 %v225
    %1185 = vmatpush2.msra.mxu0 %v224
    %1186 = vmatprep.subr.mxu0 %v217
    %1187 = vmatpush2.msra.mxu0 %v216
    %1188 = vmatprep.subr.mxu0 %v209
    %1189 = vmatpush2.msra.mxu0 %v208
    %1190 = vmatprep.subr.mxu0 %v201
    %1191 = vmatpush2.msra.mxu0 %v200
    %1192 = vmatprep.subr.mxu0 %v193
    %1193 = vmatpush2.msra.mxu0 %v192
    %1194 = vmatprep.mubr.f32.mxu0 %v57
    %1195 = vmatmul.mubr.f32.gmra.mxu0 %v56
    %v1196 = vpop.f32.mrf.mxu0
    %v1197 = vadd.f32 %v1093, %v1196
    %v1198 = vpop.f32.mrf.mxu0
    %v1199 = vadd.f32 %v1097, %v1198
    %1200 = vdwg.mxu0
    %1201 = vmatprep.subr.mxu0 %v441
    %1202 = vmatpush1.msra.mxu0 %v440
    %1203 = vmatprep.subr.mxu0 %v433
    %1204 = vmatpush1.msra.mxu0 %v432
    %1205 = vmatprep.subr.mxu0 %v425
    %1206 = vmatpush1.msra.mxu0 %v424
    %1207 = vmatprep.subr.mxu0 %v417
    %1208 = vmatpush1.msra.mxu0 %v416
    %1209 = vmatprep.subr.mxu0 %v409
    %1210 = vmatpush1.msra.mxu0 %v408
    %1211 = vmatprep.subr.mxu0 %v401
    %1212 = vmatpush1.msra.mxu0 %v400
    %1213 = vmatprep.subr.mxu0 %v393
    %1214 = vmatpush1.msra.mxu0 %v392
    %1215 = vmatprep.subr.mxu0 %v385
    %1216 = vmatpush1.msra.mxu0 %v384
    %1217 = vmatprep.subr.mxu0 %v377
    %1218 = vmatpush1.msra.mxu0 %v376
    %1219 = vmatprep.subr.mxu0 %v369
    %1220 = vmatpush1.msra.mxu0 %v368
    %1221 = vmatprep.subr.mxu0 %v361
    %1222 = vmatpush1.msra.mxu0 %v360
    %1223 = vmatprep.subr.mxu0 %v353
    %1224 = vmatpush1.msra.mxu0 %v352
    %1225 = vmatprep.subr.mxu0 %v345
    %1226 = vmatpush1.msra.mxu0 %v344
    %1227 = vmatprep.subr.mxu0 %v337
    %1228 = vmatpush1.msra.mxu0 %v336
    %1229 = vmatprep.subr.mxu0 %v329
    %1230 = vmatpush1.msra.mxu0 %v328
    %1231 = vmatprep.subr.mxu0 %v321
    %1232 = vmatpush1.msra.mxu0 %v320
    %1233 = vmatprep.subr.mxu0 %v569
    %1234 = vmatpush2.msra.mxu0 %v568
    %1235 = vmatprep.subr.mxu0 %v561
    %1236 = vmatpush2.msra.mxu0 %v560
    %1237 = vmatprep.subr.mxu0 %v553
    %1238 = vmatpush2.msra.mxu0 %v552
    %1239 = vmatprep.subr.mxu0 %v545
    %1240 = vmatpush2.msra.mxu0 %v544
    %1241 = vmatprep.subr.mxu0 %v537
    %1242 = vmatpush2.msra.mxu0 %v536
    %1243 = vmatprep.subr.mxu0 %v529
    %1244 = vmatpush2.msra.mxu0 %v528
    %1245 = vmatprep.subr.mxu0 %v521
    %1246 = vmatpush2.msra.mxu0 %v520
    %1247 = vmatprep.subr.mxu0 %v513
    %1248 = vmatpush2.msra.mxu0 %v512
    %1249 = vmatprep.subr.mxu0 %v505
    %1250 = vmatpush2.msra.mxu0 %v504
    %1251 = vmatprep.subr.mxu0 %v497
    %1252 = vmatpush2.msra.mxu0 %v496
    %1253 = vmatprep.subr.mxu0 %v489
    %1254 = vmatpush2.msra.mxu0 %v488
    %1255 = vmatprep.subr.mxu0 %v481
    %1256 = vmatpush2.msra.mxu0 %v480
    %1257 = vmatprep.subr.mxu0 %v473
    %1258 = vmatpush2.msra.mxu0 %v472
    %1259 = vmatprep.subr.mxu0 %v465
    %1260 = vmatpush2.msra.mxu0 %v464
    %1261 = vmatprep.subr.mxu0 %v457
    %1262 = vmatpush2.msra.mxu0 %v456
    %1263 = vmatprep.subr.mxu0 %v449
    %1264 = vmatpush2.msra.mxu0 %v448
    %1265 = vmatprep.mubr.f32.mxu0 %v59
    %1266 = vmatmul.mubr.f32.gmra.mxu0 %v58
    %v1267 = vpop.f32.mrf.mxu0
    %v1268 = vadd.f32 %v1197, %v1267
    %v1269 = vpop.f32.mrf.mxu0
    %v1270 = vadd.f32 %v1199, %v1269
    %1271 = vdwg.mxu0
    %1272 = vmatprep.subr.mxu0 %v697
    %1273 = vmatpush1.msra.mxu0 %v696
    %1274 = vmatprep.subr.mxu0 %v689
    %1275 = vmatpush1.msra.mxu0 %v688
    %1276 = vmatprep.subr.mxu0 %v681
    %1277 = vmatpush1.msra.mxu0 %v680
    %1278 = vmatprep.subr.mxu0 %v673
    %1279 = vmatpush1.msra.mxu0 %v672
    %1280 = vmatprep.subr.mxu0 %v665
    %1281 = vmatpush1.msra.mxu0 %v664
    %1282 = vmatprep.subr.mxu0 %v657
    %1283 = vmatpush1.msra.mxu0 %v656
    %1284 = vmatprep.subr.mxu0 %v649
    %1285 = vmatpush1.msra.mxu0 %v648
    %1286 = vmatprep.subr.mxu0 %v641
    %1287 = vmatpush1.msra.mxu0 %v640
    %1288 = vmatprep.subr.mxu0 %v633
    %1289 = vmatpush1.msra.mxu0 %v632
    %1290 = vmatprep.subr.mxu0 %v625
    %1291 = vmatpush1.msra.mxu0 %v624
    %1292 = vmatprep.subr.mxu0 %v617
    %1293 = vmatpush1.msra.mxu0 %v616
    %1294 = vmatprep.subr.mxu0 %v609
    %1295 = vmatpush1.msra.mxu0 %v608
    %1296 = vmatprep.subr.mxu0 %v601
    %1297 = vmatpush1.msra.mxu0 %v600
    %1298 = vmatprep.subr.mxu0 %v593
    %1299 = vmatpush1.msra.mxu0 %v592
    %1300 = vmatprep.subr.mxu0 %v585
    %1301 = vmatpush1.msra.mxu0 %v584
    %1302 = vmatprep.subr.mxu0 %v577
    %1303 = vmatpush1.msra.mxu0 %v576
    %1304 = vmatprep.subr.mxu0 %v825
    %1305 = vmatpush2.msra.mxu0 %v824
    %1306 = vmatprep.subr.mxu0 %v817
    %1307 = vmatpush2.msra.mxu0 %v816
    %1308 = vmatprep.subr.mxu0 %v809
    %1309 = vmatpush2.msra.mxu0 %v808
    %1310 = vmatprep.subr.mxu0 %v801
    %1311 = vmatpush2.msra.mxu0 %v800
    %1312 = vmatprep.subr.mxu0 %v793
    %1313 = vmatpush2.msra.mxu0 %v792
    %1314 = vmatprep.subr.mxu0 %v785
    %1315 = vmatpush2.msra.mxu0 %v784
    %1316 = vmatprep.subr.mxu0 %v777
    %1317 = vmatpush2.msra.mxu0 %v776
    %1318 = vmatprep.subr.mxu0 %v769
    %1319 = vmatpush2.msra.mxu0 %v768
    %1320 = vmatprep.subr.mxu0 %v761
    %1321 = vmatpush2.msra.mxu0 %v760
    %1322 = vmatprep.subr.mxu0 %v753
    %1323 = vmatpush2.msra.mxu0 %v752
    %1324 = vmatprep.subr.mxu0 %v745
    %1325 = vmatpush2.msra.mxu0 %v744
    %1326 = vmatprep.subr.mxu0 %v737
    %1327 = vmatpush2.msra.mxu0 %v736
    %1328 = vmatprep.subr.mxu0 %v729
    %1329 = vmatpush2.msra.mxu0 %v728
    %1330 = vmatprep.subr.mxu0 %v721
    %1331 = vmatpush2.msra.mxu0 %v720
    %1332 = vmatprep.subr.mxu0 %v713
    %1333 = vmatpush2.msra.mxu0 %v712
    %1334 = vmatprep.subr.mxu0 %v705
    %1335 = vmatpush2.msra.mxu0 %v704
    %1336 = vmatprep.mubr.f32.mxu0 %v61
    %1337 = vmatmul.mubr.f32.gmra.mxu0 %v60
    %v1338 = vpop.f32.mrf.mxu0
    %v1339 = vadd.f32 %v1268, %v1338
    %v1340 = vpop.f32.mrf.mxu0
    %v1341 = vadd.f32 %v1270, %v1340
    %1342 = vdwg.mxu0
    %1343 = vmatprep.subr.mxu0 %v953
    %1344 = vmatpush1.msra.mxu0 %v952
    %1345 = vmatprep.subr.mxu0 %v945
    %1346 = vmatpush1.msra.mxu0 %v944
    %1347 = vmatprep.subr.mxu0 %v937
    %1348 = vmatpush1.msra.mxu0 %v936
    %1349 = vmatprep.subr.mxu0 %v929
    %1350 = vmatpush1.msra.mxu0 %v928
    %1351 = vmatprep.subr.mxu0 %v921
    %1352 = vmatpush1.msra.mxu0 %v920
    %1353 = vmatprep.subr.mxu0 %v913
    %1354 = vmatpush1.msra.mxu0 %v912
    %1355 = vmatprep.subr.mxu0 %v905
    %1356 = vmatpush1.msra.mxu0 %v904
    %1357 = vmatprep.subr.mxu0 %v897
    %1358 = vmatpush1.msra.mxu0 %v896
    %1359 = vmatprep.subr.mxu0 %v889
    %1360 = vmatpush1.msra.mxu0 %v888
    %1361 = vmatprep.subr.mxu0 %v881
    %1362 = vmatpush1.msra.mxu0 %v880
    %1363 = vmatprep.subr.mxu0 %v873
    %1364 = vmatpush1.msra.mxu0 %v872
    %1365 = vmatprep.subr.mxu0 %v865
    %1366 = vmatpush1.msra.mxu0 %v864
    %1367 = vmatprep.subr.mxu0 %v857
    %1368 = vmatpush1.msra.mxu0 %v856
    %1369 = vmatprep.subr.mxu0 %v849
    %1370 = vmatpush1.msra.mxu0 %v848
    %1371 = vmatprep.subr.mxu0 %v841
    %1372 = vmatpush1.msra.mxu0 %v840
    %1373 = vmatprep.subr.mxu0 %v833
    %1374 = vmatpush1.msra.mxu0 %v832
    %1375 = vmatprep.subr.mxu0 %v1081
    %1376 = vmatpush2.msra.mxu0 %v1080
    %1377 = vmatprep.subr.mxu0 %v1073
    %1378 = vmatpush2.msra.mxu0 %v1072
    %1379 = vmatprep.subr.mxu0 %v1065
    %1380 = vmatpush2.msra.mxu0 %v1064
    %1381 = vmatprep.subr.mxu0 %v1057
    %1382 = vmatpush2.msra.mxu0 %v1056
    %1383 = vmatprep.subr.mxu0 %v1049
    %1384 = vmatpush2.msra.mxu0 %v1048
    %1385 = vmatprep.subr.mxu0 %v1041
    %1386 = vmatpush2.msra.mxu0 %v1040
    %1387 = vmatprep.subr.mxu0 %v1033
    %1388 = vmatpush2.msra.mxu0 %v1032
    %1389 = vmatprep.subr.mxu0 %v1025
    %1390 = vmatpush2.msra.mxu0 %v1024
    %1391 = vmatprep.subr.mxu0 %v1017
    %1392 = vmatpush2.msra.mxu0 %v1016
    %1393 = vmatprep.subr.mxu0 %v1009
    %1394 = vmatpush2.msra.mxu0 %v1008
    %1395 = vmatprep.subr.mxu0 %v1001
    %1396 = vmatpush2.msra.mxu0 %v1000
    %1397 = vmatprep.subr.mxu0 %v993
    %1398 = vmatpush2.msra.mxu0 %v992
    %1399 = vmatprep.subr.mxu0 %v985
    %1400 = vmatpush2.msra.mxu0 %v984
    %1401 = vmatprep.subr.mxu0 %v977
    %1402 = vmatpush2.msra.mxu0 %v976
    %1403 = vmatprep.subr.mxu0 %v969
    %1404 = vmatpush2.msra.mxu0 %v968
    %1405 = vmatprep.subr.mxu0 %v961
    %1406 = vmatpush2.msra.mxu0 %v960
    %1407 = vmatprep.mubr.f32.mxu0 %v63
    %1408 = vmatmul.mubr.f32.gmra.mxu0 %v62
    %v1409 = vpop.f32.mrf.mxu0
    %v1410 = vadd.f32 %v1339, %v1409
    %v1411 = vpop.f32.mrf.mxu0
    %v1412 = vadd.f32 %v1341, %v1411
    %1413 = vdwg.mxu0
    %1414 = vmatprep.subr.mxu0 %v187
    %1415 = vmatpush1.msra.mxu0 %v186
    %1416 = vmatprep.subr.mxu0 %v179
    %1417 = vmatpush1.msra.mxu0 %v178
    %1418 = vmatprep.subr.mxu0 %v171
    %1419 = vmatpush1.msra.mxu0 %v170
    %1420 = vmatprep.subr.mxu0 %v163
    %1421 = vmatpush1.msra.mxu0 %v162
    %1422 = vmatprep.subr.mxu0 %v155
    %1423 = vmatpush1.msra.mxu0 %v154
    %1424 = vmatprep.subr.mxu0 %v147
    %1425 = vmatpush1.msra.mxu0 %v146
    %1426 = vmatprep.subr.mxu0 %v139
    %1427 = vmatpush1.msra.mxu0 %v138
    %1428 = vmatprep.subr.mxu0 %v131
    %1429 = vmatpush1.msra.mxu0 %v130
    %1430 = vmatprep.subr.mxu0 %v123
    %1431 = vmatpush1.msra.mxu0 %v122
    %1432 = vmatprep.subr.mxu0 %v115
    %1433 = vmatpush1.msra.mxu0 %v114
    %1434 = vmatprep.subr.mxu0 %v107
    %1435 = vmatpush1.msra.mxu0 %v106
    %1436 = vmatprep.subr.mxu0 %v99
    %1437 = vmatpush1.msra.mxu0 %v98
    %1438 = vmatprep.subr.mxu0 %v91
    %1439 = vmatpush1.msra.mxu0 %v90
    %1440 = vmatprep.subr.mxu0 %v83
    %1441 = vmatpush1.msra.mxu0 %v82
    %1442 = vmatprep.subr.mxu0 %v75
    %1443 = vmatpush1.msra.mxu0 %v74
    %1444 = vmatprep.subr.mxu0 %v67
    %1445 = vmatpush1.msra.mxu0 %v66
    %1446 = vmatprep.subr.mxu0 %v315
    %1447 = vmatpush2.msra.mxu0 %v314
    %1448 = vmatprep.subr.mxu0 %v307
    %1449 = vmatpush2.msra.mxu0 %v306
    %1450 = vmatprep.subr.mxu0 %v299
    %1451 = vmatpush2.msra.mxu0 %v298
    %1452 = vmatprep.subr.mxu0 %v291
    %1453 = vmatpush2.msra.mxu0 %v290
    %1454 = vmatprep.subr.mxu0 %v283
    %1455 = vmatpush2.msra.mxu0 %v282
    %1456 = vmatprep.subr.mxu0 %v275
    %1457 = vmatpush2.msra.mxu0 %v274
    %1458 = vmatprep.subr.mxu0 %v267
    %1459 = vmatpush2.msra.mxu0 %v266
    %1460 = vmatprep.subr.mxu0 %v259
    %1461 = vmatpush2.msra.mxu0 %v258
    %1462 = vmatprep.subr.mxu0 %v251
    %1463 = vmatpush2.msra.mxu0 %v250
    %1464 = vmatprep.subr.mxu0 %v243
    %1465 = vmatpush2.msra.mxu0 %v242
    %1466 = vmatprep.subr.mxu0 %v235
    %1467 = vmatpush2.msra.mxu0 %v234
    %1468 = vmatprep.subr.mxu0 %v227
    %1469 = vmatpush2.msra.mxu0 %v226
    %1470 = vmatprep.subr.mxu0 %v219
    %1471 = vmatpush2.msra.mxu0 %v218
    %1472 = vmatprep.subr.mxu0 %v211
    %1473 = vmatpush2.msra.mxu0 %v210
    %1474 = vmatprep.subr.mxu0 %v203
    %1475 = vmatpush2.msra.mxu0 %v202
    %1476 = vmatprep.subr.mxu0 %v195
    %1477 = vmatpush2.msra.mxu0 %v194
    %1478 = vmatprep.mubr.f32.mxu0 %v57
    %1479 = vmatmul.mubr.f32.gmra.mxu0 %v56
    %v1480 = vpop.f32.mrf.mxu0
    %v1481 = vadd.f32 %v1101, %v1480
    %v1482 = vpop.f32.mrf.mxu0
    %v1483 = vadd.f32 %v1105, %v1482
    %1484 = vdwg.mxu0
    %1485 = vmatprep.subr.mxu0 %v443
    %1486 = vmatpush1.msra.mxu0 %v442
    %1487 = vmatprep.subr.mxu0 %v435
    %1488 = vmatpush1.msra.mxu0 %v434
    %1489 = vmatprep.subr.mxu0 %v427
    %1490 = vmatpush1.msra.mxu0 %v426
    %1491 = vmatprep.subr.mxu0 %v419
    %1492 = vmatpush1.msra.mxu0 %v418
    %1493 = vmatprep.subr.mxu0 %v411
    %1494 = vmatpush1.msra.mxu0 %v410
    %1495 = vmatprep.subr.mxu0 %v403
    %1496 = vmatpush1.msra.mxu0 %v402
    %1497 = vmatprep.subr.mxu0 %v395
    %1498 = vmatpush1.msra.mxu0 %v394
    %1499 = vmatprep.subr.mxu0 %v387
    %1500 = vmatpush1.msra.mxu0 %v386
    %1501 = vmatprep.subr.mxu0 %v379
    %1502 = vmatpush1.msra.mxu0 %v378
    %1503 = vmatprep.subr.mxu0 %v371
    %1504 = vmatpush1.msra.mxu0 %v370
    %1505 = vmatprep.subr.mxu0 %v363
    %1506 = vmatpush1.msra.mxu0 %v362
    %1507 = vmatprep.subr.mxu0 %v355
    %1508 = vmatpush1.msra.mxu0 %v354
    %1509 = vmatprep.subr.mxu0 %v347
    %1510 = vmatpush1.msra.mxu0 %v346
    %1511 = vmatprep.subr.mxu0 %v339
    %1512 = vmatpush1.msra.mxu0 %v338
    %1513 = vmatprep.subr.mxu0 %v331
    %1514 = vmatpush1.msra.mxu0 %v330
    %1515 = vmatprep.subr.mxu0 %v323
    %1516 = vmatpush1.msra.mxu0 %v322
    %1517 = vmatprep.subr.mxu0 %v571
    %1518 = vmatpush2.msra.mxu0 %v570
    %1519 = vmatprep.subr.mxu0 %v563
    %1520 = vmatpush2.msra.mxu0 %v562
    %1521 = vmatprep.subr.mxu0 %v555
    %1522 = vmatpush2.msra.mxu0 %v554
    %1523 = vmatprep.subr.mxu0 %v547
    %1524 = vmatpush2.msra.mxu0 %v546
    %1525 = vmatprep.subr.mxu0 %v539
    %1526 = vmatpush2.msra.mxu0 %v538
    %1527 = vmatprep.subr.mxu0 %v531
    %1528 = vmatpush2.msra.mxu0 %v530
    %1529 = vmatprep.subr.mxu0 %v523
    %1530 = vmatpush2.msra.mxu0 %v522
    %1531 = vmatprep.subr.mxu0 %v515
    %1532 = vmatpush2.msra.mxu0 %v514
    %1533 = vmatprep.subr.mxu0 %v507
    %1534 = vmatpush2.msra.mxu0 %v506
    %1535 = vmatprep.subr.mxu0 %v499
    %1536 = vmatpush2.msra.mxu0 %v498
    %1537 = vmatprep.subr.mxu0 %v491
    %1538 = vmatpush2.msra.mxu0 %v490
    %1539 = vmatprep.subr.mxu0 %v483
    %1540 = vmatpush2.msra.mxu0 %v482
    %1541 = vmatprep.subr.mxu0 %v475
    %1542 = vmatpush2.msra.mxu0 %v474
    %1543 = vmatprep.subr.mxu0 %v467
    %1544 = vmatpush2.msra.mxu0 %v466
    %1545 = vmatprep.subr.mxu0 %v459
    %1546 = vmatpush2.msra.mxu0 %v458
    %1547 = vmatprep.subr.mxu0 %v451
    %1548 = vmatpush2.msra.mxu0 %v450
    %1549 = vmatprep.mubr.f32.mxu0 %v59
    %1550 = vmatmul.mubr.f32.gmra.mxu0 %v58
    %v1551 = vpop.f32.mrf.mxu0
    %v1552 = vadd.f32 %v1481, %v1551
    %v1553 = vpop.f32.mrf.mxu0
    %v1554 = vadd.f32 %v1483, %v1553
    %1555 = vdwg.mxu0
    %1556 = vmatprep.subr.mxu0 %v699
    %1557 = vmatpush1.msra.mxu0 %v698
    %1558 = vmatprep.subr.mxu0 %v691
    %1559 = vmatpush1.msra.mxu0 %v690
    %1560 = vmatprep.subr.mxu0 %v683
    %1561 = vmatpush1.msra.mxu0 %v682
    %1562 = vmatprep.subr.mxu0 %v675
    %1563 = vmatpush1.msra.mxu0 %v674
    %1564 = vmatprep.subr.mxu0 %v667
    %1565 = vmatpush1.msra.mxu0 %v666
    %1566 = vmatprep.subr.mxu0 %v659
    %1567 = vmatpush1.msra.mxu0 %v658
    %1568 = vmatprep.subr.mxu0 %v651
    %1569 = vmatpush1.msra.mxu0 %v650
    %1570 = vmatprep.subr.mxu0 %v643
    %1571 = vmatpush1.msra.mxu0 %v642
    %1572 = vmatprep.subr.mxu0 %v635
    %1573 = vmatpush1.msra.mxu0 %v634
    %1574 = vmatprep.subr.mxu0 %v627
    %1575 = vmatpush1.msra.mxu0 %v626
    %1576 = vmatprep.subr.mxu0 %v619
    %1577 = vmatpush1.msra.mxu0 %v618
    %1578 = vmatprep.subr.mxu0 %v611
    %1579 = vmatpush1.msra.mxu0 %v610
    %1580 = vmatprep.subr.mxu0 %v603
    %1581 = vmatpush1.msra.mxu0 %v602
    %1582 = vmatprep.subr.mxu0 %v595
    %1583 = vmatpush1.msra.mxu0 %v594
    %1584 = vmatprep.subr.mxu0 %v587
    %1585 = vmatpush1.msra.mxu0 %v586
    %1586 = vmatprep.subr.mxu0 %v579
    %1587 = vmatpush1.msra.mxu0 %v578
    %1588 = vmatprep.subr.mxu0 %v827
    %1589 = vmatpush2.msra.mxu0 %v826
    %1590 = vmatprep.subr.mxu0 %v819
    %1591 = vmatpush2.msra.mxu0 %v818
    %1592 = vmatprep.subr.mxu0 %v811
    %1593 = vmatpush2.msra.mxu0 %v810
    %1594 = vmatprep.subr.mxu0 %v803
    %1595 = vmatpush2.msra.mxu0 %v802
    %1596 = vmatprep.subr.mxu0 %v795
    %1597 = vmatpush2.msra.mxu0 %v794
    %1598 = vmatprep.subr.mxu0 %v787
    %1599 = vmatpush2.msra.mxu0 %v786
    %1600 = vmatprep.subr.mxu0 %v779
    %1601 = vmatpush2.msra.mxu0 %v778
    %1602 = vmatprep.subr.mxu0 %v771
    %1603 = vmatpush2.msra.mxu0 %v770
    %1604 = vmatprep.subr.mxu0 %v763
    %1605 = vmatpush2.msra.mxu0 %v762
    %1606 = vmatprep.subr.mxu0 %v755
    %1607 = vmatpush2.msra.mxu0 %v754
    %1608 = vmatprep.subr.mxu0 %v747
    %1609 = vmatpush2.msra.mxu0 %v746
    %1610 = vmatprep.subr.mxu0 %v739
    %1611 = vmatpush2.msra.mxu0 %v738
    %1612 = vmatprep.subr.mxu0 %v731
    %1613 = vmatpush2.msra.mxu0 %v730
    %1614 = vmatprep.subr.mxu0 %v723
    %1615 = vmatpush2.msra.mxu0 %v722
    %1616 = vmatprep.subr.mxu0 %v715
    %1617 = vmatpush2.msra.mxu0 %v714
    %1618 = vmatprep.subr.mxu0 %v707
    %1619 = vmatpush2.msra.mxu0 %v706
    %1620 = vmatprep.mubr.f32.mxu0 %v61
    %1621 = vmatmul.mubr.f32.gmra.mxu0 %v60
    %v1622 = vpop.f32.mrf.mxu0
    %v1623 = vadd.f32 %v1552, %v1622
    %v1624 = vpop.f32.mrf.mxu0
    %v1625 = vadd.f32 %v1554, %v1624
    %1626 = vdwg.mxu0
    %1627 = vmatprep.subr.mxu0 %v955
    %1628 = vmatpush1.msra.mxu0 %v954
    %1629 = vmatprep.subr.mxu0 %v947
    %1630 = vmatpush1.msra.mxu0 %v946
    %1631 = vmatprep.subr.mxu0 %v939
    %1632 = vmatpush1.msra.mxu0 %v938
    %1633 = vmatprep.subr.mxu0 %v931
    %1634 = vmatpush1.msra.mxu0 %v930
    %1635 = vmatprep.subr.mxu0 %v923
    %1636 = vmatpush1.msra.mxu0 %v922
    %1637 = vmatprep.subr.mxu0 %v915
    %1638 = vmatpush1.msra.mxu0 %v914
    %1639 = vmatprep.subr.mxu0 %v907
    %1640 = vmatpush1.msra.mxu0 %v906
    %1641 = vmatprep.subr.mxu0 %v899
    %1642 = vmatpush1.msra.mxu0 %v898
    %1643 = vmatprep.subr.mxu0 %v891
    %1644 = vmatpush1.msra.mxu0 %v890
    %1645 = vmatprep.subr.mxu0 %v883
    %1646 = vmatpush1.msra.mxu0 %v882
    %1647 = vmatprep.subr.mxu0 %v875
    %1648 = vmatpush1.msra.mxu0 %v874
    %1649 = vmatprep.subr.mxu0 %v867
    %1650 = vmatpush1.msra.mxu0 %v866
    %1651 = vmatprep.subr.mxu0 %v859
    %1652 = vmatpush1.msra.mxu0 %v858
    %1653 = vmatprep.subr.mxu0 %v851
    %1654 = vmatpush1.msra.mxu0 %v850
    %1655 = vmatprep.subr.mxu0 %v843
    %1656 = vmatpush1.msra.mxu0 %v842
    %1657 = vmatprep.subr.mxu0 %v835
    %1658 = vmatpush1.msra.mxu0 %v834
    %1659 = vmatprep.subr.mxu0 %v1083
    %1660 = vmatpush2.msra.mxu0 %v1082
    %1661 = vmatprep.subr.mxu0 %v1075
    %1662 = vmatpush2.msra.mxu0 %v1074
    %1663 = vmatprep.subr.mxu0 %v1067
    %1664 = vmatpush2.msra.mxu0 %v1066
    %1665 = vmatprep.subr.mxu0 %v1059
    %1666 = vmatpush2.msra.mxu0 %v1058
    %1667 = vmatprep.subr.mxu0 %v1051
    %1668 = vmatpush2.msra.mxu0 %v1050
    %1669 = vmatprep.subr.mxu0 %v1043
    %1670 = vmatpush2.msra.mxu0 %v1042
    %1671 = vmatprep.subr.mxu0 %v1035
    %1672 = vmatpush2.msra.mxu0 %v1034
    %1673 = vmatprep.subr.mxu0 %v1027
    %1674 = vmatpush2.msra.mxu0 %v1026
    %1675 = vmatprep.subr.mxu0 %v1019
    %1676 = vmatpush2.msra.mxu0 %v1018
    %1677 = vmatprep.subr.mxu0 %v1011
    %1678 = vmatpush2.msra.mxu0 %v1010
    %1679 = vmatprep.subr.mxu0 %v1003
    %1680 = vmatpush2.msra.mxu0 %v1002
    %1681 = vmatprep.subr.mxu0 %v995
    %1682 = vmatpush2.msra.mxu0 %v994
    %1683 = vmatprep.subr.mxu0 %v987
    %1684 = vmatpush2.msra.mxu0 %v986
    %1685 = vmatprep.subr.mxu0 %v979
    %1686 = vmatpush2.msra.mxu0 %v978
    %1687 = vmatprep.subr.mxu0 %v971
    %1688 = vmatpush2.msra.mxu0 %v970
    %1689 = vmatprep.subr.mxu0 %v963
    %1690 = vmatpush2.msra.mxu0 %v962
    %1691 = vmatprep.mubr.f32.mxu0 %v63
    %1692 = vmatmul.mubr.f32.gmra.mxu0 %v62
    %v1693 = vpop.f32.mrf.mxu0
    %v1694 = vadd.f32 %v1623, %v1693
    %v1695 = vpop.f32.mrf.mxu0
    %v1696 = vadd.f32 %v1625, %v1695
    %1697 = vdwg.mxu0
    %1698 = vmatprep.subr.mxu0 %v189
    %1699 = vmatpush1.msra.mxu0 %v188
    %1700 = vmatprep.subr.mxu0 %v181
    %1701 = vmatpush1.msra.mxu0 %v180
    %1702 = vmatprep.subr.mxu0 %v173
    %1703 = vmatpush1.msra.mxu0 %v172
    %1704 = vmatprep.subr.mxu0 %v165
    %1705 = vmatpush1.msra.mxu0 %v164
    %1706 = vmatprep.subr.mxu0 %v157
    %1707 = vmatpush1.msra.mxu0 %v156
    %1708 = vmatprep.subr.mxu0 %v149
    %1709 = vmatpush1.msra.mxu0 %v148
    %1710 = vmatprep.subr.mxu0 %v141
    %1711 = vmatpush1.msra.mxu0 %v140
    %1712 = vmatprep.subr.mxu0 %v133
    %1713 = vmatpush1.msra.mxu0 %v132
    %1714 = vmatprep.subr.mxu0 %v125
    %1715 = vmatpush1.msra.mxu0 %v124
    %1716 = vmatprep.subr.mxu0 %v117
    %1717 = vmatpush1.msra.mxu0 %v116
    %1718 = vmatprep.subr.mxu0 %v109
    %1719 = vmatpush1.msra.mxu0 %v108
    %1720 = vmatprep.subr.mxu0 %v101
    %1721 = vmatpush1.msra.mxu0 %v100
    %1722 = vmatprep.subr.mxu0 %v93
    %1723 = vmatpush1.msra.mxu0 %v92
    %1724 = vmatprep.subr.mxu0 %v85
    %1725 = vmatpush1.msra.mxu0 %v84
    %1726 = vmatprep.subr.mxu0 %v77
    %1727 = vmatpush1.msra.mxu0 %v76
    %1728 = vmatprep.subr.mxu0 %v69
    %1729 = vmatpush1.msra.mxu0 %v68
    %1730 = vmatprep.subr.mxu0 %v317
    %1731 = vmatpush2.msra.mxu0 %v316
    %1732 = vmatprep.subr.mxu0 %v309
    %1733 = vmatpush2.msra.mxu0 %v308
    %1734 = vmatprep.subr.mxu0 %v301
    %1735 = vmatpush2.msra.mxu0 %v300
    %1736 = vmatprep.subr.mxu0 %v293
    %1737 = vmatpush2.msra.mxu0 %v292
    %1738 = vmatprep.subr.mxu0 %v285
    %1739 = vmatpush2.msra.mxu0 %v284
    %1740 = vmatprep.subr.mxu0 %v277
    %1741 = vmatpush2.msra.mxu0 %v276
    %1742 = vmatprep.subr.mxu0 %v269
    %1743 = vmatpush2.msra.mxu0 %v268
    %1744 = vmatprep.subr.mxu0 %v261
    %1745 = vmatpush2.msra.mxu0 %v260
    %1746 = vmatprep.subr.mxu0 %v253
    %1747 = vmatpush2.msra.mxu0 %v252
    %1748 = vmatprep.subr.mxu0 %v245
    %1749 = vmatpush2.msra.mxu0 %v244
    %1750 = vmatprep.subr.mxu0 %v237
    %1751 = vmatpush2.msra.mxu0 %v236
    %1752 = vmatprep.subr.mxu0 %v229
    %1753 = vmatpush2.msra.mxu0 %v228
    %1754 = vmatprep.subr.mxu0 %v221
    %1755 = vmatpush2.msra.mxu0 %v220
    %1756 = vmatprep.subr.mxu0 %v213
    %1757 = vmatpush2.msra.mxu0 %v212
    %1758 = vmatprep.subr.mxu0 %v205
    %1759 = vmatpush2.msra.mxu0 %v204
    %1760 = vmatprep.subr.mxu0 %v197
    %1761 = vmatpush2.msra.mxu0 %v196
    %1762 = vmatprep.mubr.f32.mxu0 %v57
    %1763 = vmatmul.mubr.f32.gmra.mxu0 %v56
    %v1764 = vpop.f32.mrf.mxu0
    %v1765 = vadd.f32 %v1109, %v1764
    %v1766 = vpop.f32.mrf.mxu0
    %v1767 = vadd.f32 %v1113, %v1766
    %1768 = vdwg.mxu0
    %1769 = vmatprep.subr.mxu0 %v445
    %1770 = vmatpush1.msra.mxu0 %v444
    %1771 = vmatprep.subr.mxu0 %v437
    %1772 = vmatpush1.msra.mxu0 %v436
    %1773 = vmatprep.subr.mxu0 %v429
    %1774 = vmatpush1.msra.mxu0 %v428
    %1775 = vmatprep.subr.mxu0 %v421
    %1776 = vmatpush1.msra.mxu0 %v420
    %1777 = vmatprep.subr.mxu0 %v413
    %1778 = vmatpush1.msra.mxu0 %v412
    %1779 = vmatprep.subr.mxu0 %v405
    %1780 = vmatpush1.msra.mxu0 %v404
    %1781 = vmatprep.subr.mxu0 %v397
    %1782 = vmatpush1.msra.mxu0 %v396
    %1783 = vmatprep.subr.mxu0 %v389
    %1784 = vmatpush1.msra.mxu0 %v388
    %1785 = vmatprep.subr.mxu0 %v381
    %1786 = vmatpush1.msra.mxu0 %v380
    %1787 = vmatprep.subr.mxu0 %v373
    %1788 = vmatpush1.msra.mxu0 %v372
    %1789 = vmatprep.subr.mxu0 %v365
    %1790 = vmatpush1.msra.mxu0 %v364
    %1791 = vmatprep.subr.mxu0 %v357
    %1792 = vmatpush1.msra.mxu0 %v356
    %1793 = vmatprep.subr.mxu0 %v349
    %1794 = vmatpush1.msra.mxu0 %v348
    %1795 = vmatprep.subr.mxu0 %v341
    %1796 = vmatpush1.msra.mxu0 %v340
    %1797 = vmatprep.subr.mxu0 %v333
    %1798 = vmatpush1.msra.mxu0 %v332
    %1799 = vmatprep.subr.mxu0 %v325
    %1800 = vmatpush1.msra.mxu0 %v324
    %1801 = vmatprep.subr.mxu0 %v573
    %1802 = vmatpush2.msra.mxu0 %v572
    %1803 = vmatprep.subr.mxu0 %v565
    %1804 = vmatpush2.msra.mxu0 %v564
    %1805 = vmatprep.subr.mxu0 %v557
    %1806 = vmatpush2.msra.mxu0 %v556
    %1807 = vmatprep.subr.mxu0 %v549
    %1808 = vmatpush2.msra.mxu0 %v548
    %1809 = vmatprep.subr.mxu0 %v541
    %1810 = vmatpush2.msra.mxu0 %v540
    %1811 = vmatprep.subr.mxu0 %v533
    %1812 = vmatpush2.msra.mxu0 %v532
    %1813 = vmatprep.subr.mxu0 %v525
    %1814 = vmatpush2.msra.mxu0 %v524
    %1815 = vmatprep.subr.mxu0 %v517
    %1816 = vmatpush2.msra.mxu0 %v516
    %1817 = vmatprep.subr.mxu0 %v509
    %1818 = vmatpush2.msra.mxu0 %v508
    %1819 = vmatprep.subr.mxu0 %v501
    %1820 = vmatpush2.msra.mxu0 %v500
    %1821 = vmatprep.subr.mxu0 %v493
    %1822 = vmatpush2.msra.mxu0 %v492
    %1823 = vmatprep.subr.mxu0 %v485
    %1824 = vmatpush2.msra.mxu0 %v484
    %1825 = vmatprep.subr.mxu0 %v477
    %1826 = vmatpush2.msra.mxu0 %v476
    %1827 = vmatprep.subr.mxu0 %v469
    %1828 = vmatpush2.msra.mxu0 %v468
    %1829 = vmatprep.subr.mxu0 %v461
    %1830 = vmatpush2.msra.mxu0 %v460
    %1831 = vmatprep.subr.mxu0 %v453
    %1832 = vmatpush2.msra.mxu0 %v452
    %1833 = vmatprep.mubr.f32.mxu0 %v59
    %1834 = vmatmul.mubr.f32.gmra.mxu0 %v58
    %v1835 = vpop.f32.mrf.mxu0
    %v1836 = vadd.f32 %v1765, %v1835
    %v1837 = vpop.f32.mrf.mxu0
    %v1838 = vadd.f32 %v1767, %v1837
    %1839 = vdwg.mxu0
    %1840 = vmatprep.subr.mxu0 %v701
    %1841 = vmatpush1.msra.mxu0 %v700
    %1842 = vmatprep.subr.mxu0 %v693
    %1843 = vmatpush1.msra.mxu0 %v692
    %1844 = vmatprep.subr.mxu0 %v685
    %1845 = vmatpush1.msra.mxu0 %v684
    %1846 = vmatprep.subr.mxu0 %v677
    %1847 = vmatpush1.msra.mxu0 %v676
    %1848 = vmatprep.subr.mxu0 %v669
    %1849 = vmatpush1.msra.mxu0 %v668
    %1850 = vmatprep.subr.mxu0 %v661
    %1851 = vmatpush1.msra.mxu0 %v660
    %1852 = vmatprep.subr.mxu0 %v653
    %1853 = vmatpush1.msra.mxu0 %v652
    %1854 = vmatprep.subr.mxu0 %v645
    %1855 = vmatpush1.msra.mxu0 %v644
    %1856 = vmatprep.subr.mxu0 %v637
    %1857 = vmatpush1.msra.mxu0 %v636
    %1858 = vmatprep.subr.mxu0 %v629
    %1859 = vmatpush1.msra.mxu0 %v628
    %1860 = vmatprep.subr.mxu0 %v621
    %1861 = vmatpush1.msra.mxu0 %v620
    %1862 = vmatprep.subr.mxu0 %v613
    %1863 = vmatpush1.msra.mxu0 %v612
    %1864 = vmatprep.subr.mxu0 %v605
    %1865 = vmatpush1.msra.mxu0 %v604
    %1866 = vmatprep.subr.mxu0 %v597
    %1867 = vmatpush1.msra.mxu0 %v596
    %1868 = vmatprep.subr.mxu0 %v589
    %1869 = vmatpush1.msra.mxu0 %v588
    %1870 = vmatprep.subr.mxu0 %v581
    %1871 = vmatpush1.msra.mxu0 %v580
    %1872 = vmatprep.subr.mxu0 %v829
    %1873 = vmatpush2.msra.mxu0 %v828
    %1874 = vmatprep.subr.mxu0 %v821
    %1875 = vmatpush2.msra.mxu0 %v820
    %1876 = vmatprep.subr.mxu0 %v813
    %1877 = vmatpush2.msra.mxu0 %v812
    %1878 = vmatprep.subr.mxu0 %v805
    %1879 = vmatpush2.msra.mxu0 %v804
    %1880 = vmatprep.subr.mxu0 %v797
    %1881 = vmatpush2.msra.mxu0 %v796
    %1882 = vmatprep.subr.mxu0 %v789
    %1883 = vmatpush2.msra.mxu0 %v788
    %1884 = vmatprep.subr.mxu0 %v781
    %1885 = vmatpush2.msra.mxu0 %v780
    %1886 = vmatprep.subr.mxu0 %v773
    %1887 = vmatpush2.msra.mxu0 %v772
    %1888 = vmatprep.subr.mxu0 %v765
    %1889 = vmatpush2.msra.mxu0 %v764
    %1890 = vmatprep.subr.mxu0 %v757
    %1891 = vmatpush2.msra.mxu0 %v756
    %1892 = vmatprep.subr.mxu0 %v749
    %1893 = vmatpush2.msra.mxu0 %v748
    %1894 = vmatprep.subr.mxu0 %v741
    %1895 = vmatpush2.msra.mxu0 %v740
    %1896 = vmatprep.subr.mxu0 %v733
    %1897 = vmatpush2.msra.mxu0 %v732
    %1898 = vmatprep.subr.mxu0 %v725
    %1899 = vmatpush2.msra.mxu0 %v724
    %1900 = vmatprep.subr.mxu0 %v717
    %1901 = vmatpush2.msra.mxu0 %v716
    %1902 = vmatprep.subr.mxu0 %v709
    %1903 = vmatpush2.msra.mxu0 %v708
    %1904 = vmatprep.mubr.f32.mxu0 %v61
    %1905 = vmatmul.mubr.f32.gmra.mxu0 %v60
    %v1906 = vpop.f32.mrf.mxu0
    %v1907 = vadd.f32 %v1836, %v1906
    %v1908 = vpop.f32.mrf.mxu0
    %v1909 = vadd.f32 %v1838, %v1908
    %1910 = vdwg.mxu0
    %1911 = vmatprep.subr.mxu0 %v957
    %1912 = vmatpush1.msra.mxu0 %v956
    %1913 = vmatprep.subr.mxu0 %v949
    %1914 = vmatpush1.msra.mxu0 %v948
    %1915 = vmatprep.subr.mxu0 %v941
    %1916 = vmatpush1.msra.mxu0 %v940
    %1917 = vmatprep.subr.mxu0 %v933
    %1918 = vmatpush1.msra.mxu0 %v932
    %1919 = vmatprep.subr.mxu0 %v925
    %1920 = vmatpush1.msra.mxu0 %v924
    %1921 = vmatprep.subr.mxu0 %v917
    %1922 = vmatpush1.msra.mxu0 %v916
    %1923 = vmatprep.subr.mxu0 %v909
    %1924 = vmatpush1.msra.mxu0 %v908
    %1925 = vmatprep.subr.mxu0 %v901
    %1926 = vmatpush1.msra.mxu0 %v900
    %1927 = vmatprep.subr.mxu0 %v893
    %1928 = vmatpush1.msra.mxu0 %v892
    %1929 = vmatprep.subr.mxu0 %v885
    %1930 = vmatpush1.msra.mxu0 %v884
    %1931 = vmatprep.subr.mxu0 %v877
    %1932 = vmatpush1.msra.mxu0 %v876
    %1933 = vmatprep.subr.mxu0 %v869
    %1934 = vmatpush1.msra.mxu0 %v868
    %1935 = vmatprep.subr.mxu0 %v861
    %1936 = vmatpush1.msra.mxu0 %v860
    %1937 = vmatprep.subr.mxu0 %v853
    %1938 = vmatpush1.msra.mxu0 %v852
    %1939 = vmatprep.subr.mxu0 %v845
    %1940 = vmatpush1.msra.mxu0 %v844
    %1941 = vmatprep.subr.mxu0 %v837
    %1942 = vmatpush1.msra.mxu0 %v836
    %1943 = vmatprep.subr.mxu0 %v1085
    %1944 = vmatpush2.msra.mxu0 %v1084
    %1945 = vmatprep.subr.mxu0 %v1077
    %1946 = vmatpush2.msra.mxu0 %v1076
    %1947 = vmatprep.subr.mxu0 %v1069
    %1948 = vmatpush2.msra.mxu0 %v1068
    %1949 = vmatprep.subr.mxu0 %v1061
    %1950 = vmatpush2.msra.mxu0 %v1060
    %1951 = vmatprep.subr.mxu0 %v1053
    %1952 = vmatpush2.msra.mxu0 %v1052
    %1953 = vmatprep.subr.mxu0 %v1045
    %1954 = vmatpush2.msra.mxu0 %v1044
    %1955 = vmatprep.subr.mxu0 %v1037
    %1956 = vmatpush2.msra.mxu0 %v1036
    %1957 = vmatprep.subr.mxu0 %v1029
    %1958 = vmatpush2.msra.mxu0 %v1028
    %1959 = vmatprep.subr.mxu0 %v1021
    %1960 = vmatpush2.msra.mxu0 %v1020
    %1961 = vmatprep.subr.mxu0 %v1013
    %1962 = vmatpush2.msra.mxu0 %v1012
    %1963 = vmatprep.subr.mxu0 %v1005
    %1964 = vmatpush2.msra.mxu0 %v1004
    %1965 = vmatprep.subr.mxu0 %v997
    %1966 = vmatpush2.msra.mxu0 %v996
    %1967 = vmatprep.subr.mxu0 %v989
    %1968 = vmatpush2.msra.mxu0 %v988
    %1969 = vmatprep.subr.mxu0 %v981
    %1970 = vmatpush2.msra.mxu0 %v980
    %1971 = vmatprep.subr.mxu0 %v973
    %1972 = vmatpush2.msra.mxu0 %v972
    %1973 = vmatprep.subr.mxu0 %v965
    %1974 = vmatpush2.msra.mxu0 %v964
    %1975 = vmatprep.mubr.f32.mxu0 %v63
    %1976 = vmatmul.mubr.f32.gmra.mxu0 %v62
    %v1977 = vpop.f32.mrf.mxu0
    %v1978 = vadd.f32 %v1907, %v1977
    %v1979 = vpop.f32.mrf.mxu0
    %v1980 = vadd.f32 %v1909, %v1979
    %1981 = vdwg.mxu0
    %1982 = vmatprep.subr.mxu0 %v191
    %1983 = vmatpush1.msra.mxu0 %v190
    %1984 = vmatprep.subr.mxu0 %v183
    %1985 = vmatpush1.msra.mxu0 %v182
    %1986 = vmatprep.subr.mxu0 %v175
    %1987 = vmatpush1.msra.mxu0 %v174
    %1988 = vmatprep.subr.mxu0 %v167
    %1989 = vmatpush1.msra.mxu0 %v166
    %1990 = vmatprep.subr.mxu0 %v159
    %1991 = vmatpush1.msra.mxu0 %v158
    %1992 = vmatprep.subr.mxu0 %v151
    %1993 = vmatpush1.msra.mxu0 %v150
    %1994 = vmatprep.subr.mxu0 %v143
    %1995 = vmatpush1.msra.mxu0 %v142
    %1996 = vmatprep.subr.mxu0 %v135
    %1997 = vmatpush1.msra.mxu0 %v134
    %1998 = vmatprep.subr.mxu0 %v127
    %1999 = vmatpush1.msra.mxu0 %v126
    %2000 = vmatprep.subr.mxu0 %v119
    %2001 = vmatpush1.msra.mxu0 %v118
    %2002 = vmatprep.subr.mxu0 %v111
    %2003 = vmatpush1.msra.mxu0 %v110
    %2004 = vmatprep.subr.mxu0 %v103
    %2005 = vmatpush1.msra.mxu0 %v102
    %2006 = vmatprep.subr.mxu0 %v95
    %2007 = vmatpush1.msra.mxu0 %v94
    %2008 = vmatprep.subr.mxu0 %v87
    %2009 = vmatpush1.msra.mxu0 %v86
    %2010 = vmatprep.subr.mxu0 %v79
    %2011 = vmatpush1.msra.mxu0 %v78
    %2012 = vmatprep.subr.mxu0 %v71
    %2013 = vmatpush1.msra.mxu0 %v70
    %2014 = vmatprep.subr.mxu0 %v319
    %2015 = vmatpush2.msra.mxu0 %v318
    %2016 = vmatprep.subr.mxu0 %v311
    %2017 = vmatpush2.msra.mxu0 %v310
    %2018 = vmatprep.subr.mxu0 %v303
    %2019 = vmatpush2.msra.mxu0 %v302
    %2020 = vmatprep.subr.mxu0 %v295
    %2021 = vmatpush2.msra.mxu0 %v294
    %2022 = vmatprep.subr.mxu0 %v287
    %2023 = vmatpush2.msra.mxu0 %v286
    %2024 = vmatprep.subr.mxu0 %v279
    %2025 = vmatpush2.msra.mxu0 %v278
    %2026 = vmatprep.subr.mxu0 %v271
    %2027 = vmatpush2.msra.mxu0 %v270
    %2028 = vmatprep.subr.mxu0 %v263
    %2029 = vmatpush2.msra.mxu0 %v262
    %2030 = vmatprep.subr.mxu0 %v255
    %2031 = vmatpush2.msra.mxu0 %v254
    %2032 = vmatprep.subr.mxu0 %v247
    %2033 = vmatpush2.msra.mxu0 %v246
    %2034 = vmatprep.subr.mxu0 %v239
    %2035 = vmatpush2.msra.mxu0 %v238
    %2036 = vmatprep.subr.mxu0 %v231
    %2037 = vmatpush2.msra.mxu0 %v230
    %2038 = vmatprep.subr.mxu0 %v223
    %2039 = vmatpush2.msra.mxu0 %v222
    %2040 = vmatprep.subr.mxu0 %v215
    %2041 = vmatpush2.msra.mxu0 %v214
    %2042 = vmatprep.subr.mxu0 %v207
    %2043 = vmatpush2.msra.mxu0 %v206
    %2044 = vmatprep.subr.mxu0 %v199
    %2045 = vmatpush2.msra.mxu0 %v198
    %2046 = vmatprep.mubr.f32.mxu0 %v57
    %2047 = vmatmul.mubr.f32.gmra.mxu0 %v56
    %v2048 = vpop.f32.mrf.mxu0
    %v2049 = vadd.f32 %v1117, %v2048
    %v2050 = vpop.f32.mrf.mxu0
    %v2051 = vadd.f32 %v1121, %v2050
    %2052 = vdwg.mxu0
    %2053 = vmatprep.subr.mxu0 %v447
    %2054 = vmatpush1.msra.mxu0 %v446
    %2055 = vmatprep.subr.mxu0 %v439
    %2056 = vmatpush1.msra.mxu0 %v438
    %2057 = vmatprep.subr.mxu0 %v431
    %2058 = vmatpush1.msra.mxu0 %v430
    %2059 = vmatprep.subr.mxu0 %v423
    %2060 = vmatpush1.msra.mxu0 %v422
    %2061 = vmatprep.subr.mxu0 %v415
    %2062 = vmatpush1.msra.mxu0 %v414
    %2063 = vmatprep.subr.mxu0 %v407
    %2064 = vmatpush1.msra.mxu0 %v406
    %2065 = vmatprep.subr.mxu0 %v399
    %2066 = vmatpush1.msra.mxu0 %v398
    %2067 = vmatprep.subr.mxu0 %v391
    %2068 = vmatpush1.msra.mxu0 %v390
    %2069 = vmatprep.subr.mxu0 %v383
    %2070 = vmatpush1.msra.mxu0 %v382
    %2071 = vmatprep.subr.mxu0 %v375
    %2072 = vmatpush1.msra.mxu0 %v374
    %2073 = vmatprep.subr.mxu0 %v367
    %2074 = vmatpush1.msra.mxu0 %v366
    %2075 = vmatprep.subr.mxu0 %v359
    %2076 = vmatpush1.msra.mxu0 %v358
    %2077 = vmatprep.subr.mxu0 %v351
    %2078 = vmatpush1.msra.mxu0 %v350
    %2079 = vmatprep.subr.mxu0 %v343
    %2080 = vmatpush1.msra.mxu0 %v342
    %2081 = vmatprep.subr.mxu0 %v335
    %2082 = vmatpush1.msra.mxu0 %v334
    %2083 = vmatprep.subr.mxu0 %v327
    %2084 = vmatpush1.msra.mxu0 %v326
    %2085 = vmatprep.subr.mxu0 %v575
    %2086 = vmatpush2.msra.mxu0 %v574
    %2087 = vmatprep.subr.mxu0 %v567
    %2088 = vmatpush2.msra.mxu0 %v566
    %2089 = vmatprep.subr.mxu0 %v559
    %2090 = vmatpush2.msra.mxu0 %v558
    %2091 = vmatprep.subr.mxu0 %v551
    %2092 = vmatpush2.msra.mxu0 %v550
    %2093 = vmatprep.subr.mxu0 %v543
    %2094 = vmatpush2.msra.mxu0 %v542
    %2095 = vmatprep.subr.mxu0 %v535
    %2096 = vmatpush2.msra.mxu0 %v534
    %2097 = vmatprep.subr.mxu0 %v527
    %2098 = vmatpush2.msra.mxu0 %v526
    %2099 = vmatprep.subr.mxu0 %v519
    %2100 = vmatpush2.msra.mxu0 %v518
    %2101 = vmatprep.subr.mxu0 %v511
    %2102 = vmatpush2.msra.mxu0 %v510
    %2103 = vmatprep.subr.mxu0 %v503
    %2104 = vmatpush2.msra.mxu0 %v502
    %2105 = vmatprep.subr.mxu0 %v495
    %2106 = vmatpush2.msra.mxu0 %v494
    %2107 = vmatprep.subr.mxu0 %v487
    %2108 = vmatpush2.msra.mxu0 %v486
    %2109 = vmatprep.subr.mxu0 %v479
    %2110 = vmatpush2.msra.mxu0 %v478
    %2111 = vmatprep.subr.mxu0 %v471
    %2112 = vmatpush2.msra.mxu0 %v470
    %2113 = vmatprep.subr.mxu0 %v463
    %2114 = vmatpush2.msra.mxu0 %v462
    %2115 = vmatprep.subr.mxu0 %v455
    %2116 = vmatpush2.msra.mxu0 %v454
    %2117 = vmatprep.mubr.f32.mxu0 %v59
    %2118 = vmatmul.mubr.f32.gmra.mxu0 %v58
    %v2119 = vpop.f32.mrf.mxu0
    %v2120 = vadd.f32 %v2049, %v2119
    %v2121 = vpop.f32.mrf.mxu0
    %v2122 = vadd.f32 %v2051, %v2121
    %2123 = vdwg.mxu0
    %2124 = vmatprep.subr.mxu0 %v703
    %2125 = vmatpush1.msra.mxu0 %v702
    %2126 = vmatprep.subr.mxu0 %v695
    %2127 = vmatpush1.msra.mxu0 %v694
    %2128 = vmatprep.subr.mxu0 %v687
    %2129 = vmatpush1.msra.mxu0 %v686
    %2130 = vmatprep.subr.mxu0 %v679
    %2131 = vmatpush1.msra.mxu0 %v678
    %2132 = vmatprep.subr.mxu0 %v671
    %2133 = vmatpush1.msra.mxu0 %v670
    %2134 = vmatprep.subr.mxu0 %v663
    %2135 = vmatpush1.msra.mxu0 %v662
    %2136 = vmatprep.subr.mxu0 %v655
    %2137 = vmatpush1.msra.mxu0 %v654
    %2138 = vmatprep.subr.mxu0 %v647
    %2139 = vmatpush1.msra.mxu0 %v646
    %2140 = vmatprep.subr.mxu0 %v639
    %2141 = vmatpush1.msra.mxu0 %v638
    %2142 = vmatprep.subr.mxu0 %v631
    %2143 = vmatpush1.msra.mxu0 %v630
    %2144 = vmatprep.subr.mxu0 %v623
    %2145 = vmatpush1.msra.mxu0 %v622
    %2146 = vmatprep.subr.mxu0 %v615
    %2147 = vmatpush1.msra.mxu0 %v614
    %2148 = vmatprep.subr.mxu0 %v607
    %2149 = vmatpush1.msra.mxu0 %v606
    %2150 = vmatprep.subr.mxu0 %v599
    %2151 = vmatpush1.msra.mxu0 %v598
    %2152 = vmatprep.subr.mxu0 %v591
    %2153 = vmatpush1.msra.mxu0 %v590
    %2154 = vmatprep.subr.mxu0 %v583
    %2155 = vmatpush1.msra.mxu0 %v582
    %2156 = vmatprep.subr.mxu0 %v831
    %2157 = vmatpush2.msra.mxu0 %v830
    %2158 = vmatprep.subr.mxu0 %v823
    %2159 = vmatpush2.msra.mxu0 %v822
    %2160 = vmatprep.subr.mxu0 %v815
    %2161 = vmatpush2.msra.mxu0 %v814
    %2162 = vmatprep.subr.mxu0 %v807
    %2163 = vmatpush2.msra.mxu0 %v806
    %2164 = vmatprep.subr.mxu0 %v799
    %2165 = vmatpush2.msra.mxu0 %v798
    %2166 = vmatprep.subr.mxu0 %v791
    %2167 = vmatpush2.msra.mxu0 %v790
    %2168 = vmatprep.subr.mxu0 %v783
    %2169 = vmatpush2.msra.mxu0 %v782
    %2170 = vmatprep.subr.mxu0 %v775
    %2171 = vmatpush2.msra.mxu0 %v774
    %2172 = vmatprep.subr.mxu0 %v767
    %2173 = vmatpush2.msra.mxu0 %v766
    %2174 = vmatprep.subr.mxu0 %v759
    %2175 = vmatpush2.msra.mxu0 %v758
    %2176 = vmatprep.subr.mxu0 %v751
    %2177 = vmatpush2.msra.mxu0 %v750
    %2178 = vmatprep.subr.mxu0 %v743
    %2179 = vmatpush2.msra.mxu0 %v742
    %2180 = vmatprep.subr.mxu0 %v735
    %2181 = vmatpush2.msra.mxu0 %v734
    %2182 = vmatprep.subr.mxu0 %v727
    %2183 = vmatpush2.msra.mxu0 %v726
    %2184 = vmatprep.subr.mxu0 %v719
    %2185 = vmatpush2.msra.mxu0 %v718
    %2186 = vmatprep.subr.mxu0 %v711
    %2187 = vmatpush2.msra.mxu0 %v710
    %2188 = vmatprep.mubr.f32.mxu0 %v61
    %2189 = vmatmul.mubr.f32.gmra.mxu0 %v60
    %v2190 = vpop.f32.mrf.mxu0
    %v2191 = vadd.f32 %v2120, %v2190
    %v2192 = vpop.f32.mrf.mxu0
    %v2193 = vadd.f32 %v2122, %v2192
    %2194 = vdwg.mxu0
    %2195 = vmatprep.subr.mxu0 %v959
    %2196 = vmatpush1.msra.mxu0 %v958
    %2197 = vmatprep.subr.mxu0 %v951
    %2198 = vmatpush1.msra.mxu0 %v950
    %2199 = vmatprep.subr.mxu0 %v943
    %2200 = vmatpush1.msra.mxu0 %v942
    %2201 = vmatprep.subr.mxu0 %v935
    %2202 = vmatpush1.msra.mxu0 %v934
    %2203 = vmatprep.subr.mxu0 %v927
    %2204 = vmatpush1.msra.mxu0 %v926
    %2205 = vmatprep.subr.mxu0 %v919
    %2206 = vmatpush1.msra.mxu0 %v918
    %2207 = vmatprep.subr.mxu0 %v911
    %2208 = vmatpush1.msra.mxu0 %v910
    %2209 = vmatprep.subr.mxu0 %v903
    %2210 = vmatpush1.msra.mxu0 %v902
    %2211 = vmatprep.subr.mxu0 %v895
    %2212 = vmatpush1.msra.mxu0 %v894
    %2213 = vmatprep.subr.mxu0 %v887
    %2214 = vmatpush1.msra.mxu0 %v886
    %2215 = vmatprep.subr.mxu0 %v879
    %2216 = vmatpush1.msra.mxu0 %v878
    %2217 = vmatprep.subr.mxu0 %v871
    %2218 = vmatpush1.msra.mxu0 %v870
    %2219 = vmatprep.subr.mxu0 %v863
    %2220 = vmatpush1.msra.mxu0 %v862
    %2221 = vmatprep.subr.mxu0 %v855
    %2222 = vmatpush1.msra.mxu0 %v854
    %2223 = vmatprep.subr.mxu0 %v847
    %2224 = vmatpush1.msra.mxu0 %v846
    %2225 = vmatprep.subr.mxu0 %v839
    %2226 = vmatpush1.msra.mxu0 %v838
    %2227 = vmatprep.subr.mxu0 %v1087
    %2228 = vmatpush2.msra.mxu0 %v1086
    %2229 = vmatprep.subr.mxu0 %v1079
    %2230 = vmatpush2.msra.mxu0 %v1078
    %2231 = vmatprep.subr.mxu0 %v1071
    %2232 = vmatpush2.msra.mxu0 %v1070
    %2233 = vmatprep.subr.mxu0 %v1063
    %2234 = vmatpush2.msra.mxu0 %v1062
    %2235 = vmatprep.subr.mxu0 %v1055
    %2236 = vmatpush2.msra.mxu0 %v1054
    %2237 = vmatprep.subr.mxu0 %v1047
    %2238 = vmatpush2.msra.mxu0 %v1046
    %2239 = vmatprep.subr.mxu0 %v1039
    %2240 = vmatpush2.msra.mxu0 %v1038
    %2241 = vmatprep.subr.mxu0 %v1031
    %2242 = vmatpush2.msra.mxu0 %v1030
    %2243 = vmatprep.subr.mxu0 %v1023
    %2244 = vmatpush2.msra.mxu0 %v1022
    %2245 = vmatprep.subr.mxu0 %v1015
    %2246 = vmatpush2.msra.mxu0 %v1014
    %2247 = vmatprep.subr.mxu0 %v1007
    %2248 = vmatpush2.msra.mxu0 %v1006
    %2249 = vmatprep.subr.mxu0 %v999
    %2250 = vmatpush2.msra.mxu0 %v998
    %2251 = vmatprep.subr.mxu0 %v991
    %2252 = vmatpush2.msra.mxu0 %v990
    %2253 = vmatprep.subr.mxu0 %v983
    %2254 = vmatpush2.msra.mxu0 %v982
    %2255 = vmatprep.subr.mxu0 %v975
    %2256 = vmatpush2.msra.mxu0 %v974
    %2257 = vmatprep.subr.mxu0 %v967
    %2258 = vmatpush2.msra.mxu0 %v966
    %2259 = vmatprep.mubr.f32.mxu0 %v63
    %2260 = vmatmul.mubr.f32.gmra.mxu0 %v62
    %v2261 = vpop.f32.mrf.mxu0
    %v2262 = vadd.f32 %v2191, %v2261
    %v2263 = vpop.f32.mrf.mxu0
    %v2264 = vadd.f32 %v2193, %v2263
    %2265 = vdwg.mxu0
    %v2266 = vmul.f32 %v1410, 0.5
    %v2267 = vmul.f32 %v1412, 0.5
    %v2268 = vmul.f32 %v1694, 0.5
    %v2269 = vmul.f32 %v1696, 0.5
    %v2270 = vmul.f32 %v1978, 0.5
    %v2271 = vmul.f32 %v1980, 0.5
    %v2272 = vmul.f32 %v2262, 0.5
    %v2273 = vmul.f32 %v2264, 0.5
    %v2274 = vmul.f32 %v1410, 0.70710677
    %v2275 = vmul.f32 %v1412, 0.70710677
    %v2276 = vmul.f32 %v1694, 0.70710677
    %v2277 = vmul.f32 %v1696, 0.70710677
    %v2278 = vmul.f32 %v1978, 0.70710677
    %v2279 = vmul.f32 %v1980, 0.70710677
    %v2280 = vmul.f32 %v2262, 0.70710677
    %v2281 = vmul.f32 %v2264, 0.70710677
    %v2282 = verf.f32.pop %v2274
    %v2283 = verf.f32.pop %v2275
    %v2284 = verf.f32.pop %v2276
    %v2285 = verf.f32.pop %v2277
    %v2286 = verf.f32.pop %v2278
    %v2287 = verf.f32.pop %v2279
    %v2288 = verf.f32.pop %v2280
    %v2289 = verf.f32.pop %v2281
    %v2290 = vadd.f32 %v2282, 1.0
    %v2291 = vadd.f32 %v2283, 1.0
    %v2292 = vadd.f32 %v2284, 1.0
    %v2293 = vadd.f32 %v2285, 1.0
    %v2294 = vadd.f32 %v2286, 1.0
    %v2295 = vadd.f32 %v2287, 1.0
    %v2296 = vadd.f32 %v2288, 1.0
    %v2297 = vadd.f32 %v2289, 1.0
    %v2298 = vmul.f32 %v2266, %v2290
    %v2299 = vmul.f32 %v2267, %v2291
    %v2300 = vmul.f32 %v2268, %v2292
    %v2301 = vmul.f32 %v2269, %v2293
    %v2302 = vmul.f32 %v2270, %v2294
    %v2303 = vmul.f32 %v2271, %v2295
    %v2304 = vmul.f32 %v2272, %v2296
    %v2305 = vmul.f32 %v2273, %v2297
    %v2306 = vlaneseq
    %v2307 = vshrl.u32 %v2306, 7
    %s2308 = smul.u32 0, 8
    %v2309 = vstv %s2308
    %v2310 = vadd.s32 %v2307, %v2309
    %vm2311 = vcmp.lt.s32.totalorder %v2310, 2
    %v2312 = vsel %vm2311, 1, 0
    %vm2313 = vcmp.eq.s32.totalorder %v2312, 1
    %v2314 = vsel %vm2313, %v2298, 0.0
    %v2315 = vsel %vm2313, %v2299, 0.0
    %v2316 = vsel %vm2313, %v2300, 0.0
    %v2317 = vsel %vm2313, %v2301, 0.0
    %v2318 = vsel %vm2313, %v2302, 0.0
    %v2319 = vsel %vm2313, %v2303, 0.0
    %v2320 = vsel %vm2313, %v2304, 0.0
    %v2321 = vsel %vm2313, %v2305, 0.0
    %2322 = vst [vmem:[#allocation8] sm:$0xff] %v2314
    %2323 = vst [vmem:[#allocation8 + $0x8] sm:$0xff] %v2315
    %2324 = vst [vmem:[#allocation8 + $0x10] sm:$0xff] %v2316
    %2325 = vst [vmem:[#allocation8 + $0x18] sm:$0xff] %v2317
    %2326 = vst [vmem:[#allocation8 + $0x20] sm:$0xff] %v2318
    %2327 = vst [vmem:[#allocation8 + $0x28] sm:$0xff] %v2319
    %2328 = vst [vmem:[#allocation8 + $0x30] sm:$0xff] %v2320
    %2329 = vst [vmem:[#allocation8 + $0x38] sm:$0xff] %v2321
    %v2330 = vrot.slane %v2314, 4
    %v2331 = vadd.f32 %v2314, %v2330
    %v2332 = vrot.slane %v2331, 2
    %v2333 = vadd.f32 %v2331, %v2332
    %v2334 = vrot.slane %v2333, 1
    %v2335 = vadd.f32 %v2333, %v2334
    %v2336 = vrot.slane %v2315, 4
    %v2337 = vadd.f32 %v2315, %v2336
    %v2338 = vrot.slane %v2337, 2
    %v2339 = vadd.f32 %v2337, %v2338
    %v2340 = vrot.slane %v2339, 1
    %v2341 = vadd.f32 %v2339, %v2340
    %v2342 = vrot.slane %v2316, 4
    %v2343 = vadd.f32 %v2316, %v2342
    %v2344 = vrot.slane %v2343, 2
    %v2345 = vadd.f32 %v2343, %v2344
    %v2346 = vrot.slane %v2345, 1
    %v2347 = vadd.f32 %v2345, %v2346
    %v2348 = vrot.slane %v2317, 4
    %v2349 = vadd.f32 %v2317, %v2348
    %v2350 = vrot.slane %v2349, 2
    %v2351 = vadd.f32 %v2349, %v2350
    %v2352 = vrot.slane %v2351, 1
    %v2353 = vadd.f32 %v2351, %v2352
    %v2354 = vrot.slane %v2318, 4
    %v2355 = vadd.f32 %v2318, %v2354
    %v2356 = vrot.slane %v2355, 2
    %v2357 = vadd.f32 %v2355, %v2356
    %v2358 = vrot.slane %v2357, 1
    %v2359 = vadd.f32 %v2357, %v2358
    %v2360 = vrot.slane %v2319, 4
    %v2361 = vadd.f32 %v2319, %v2360
    %v2362 = vrot.slane %v2361, 2
    %v2363 = vadd.f32 %v2361, %v2362
    %v2364 = vrot.slane %v2363, 1
    %v2365 = vadd.f32 %v2363, %v2364
    %v2366 = vrot.slane %v2320, 4
    %v2367 = vadd.f32 %v2320, %v2366
    %v2368 = vrot.slane %v2367, 2
    %v2369 = vadd.f32 %v2367, %v2368
    %v2370 = vrot.slane %v2369, 1
    %v2371 = vadd.f32 %v2369, %v2370
    %v2372 = vrot.slane %v2321, 4
    %v2373 = vadd.f32 %v2321, %v2372
    %v2374 = vrot.slane %v2373, 2
    %v2375 = vadd.f32 %v2373, %v2374
    %v2376 = vrot.slane %v2375, 1
    %v2377 = vadd.f32 %v2375, %v2376
    %v2378 = vmul.f32 %v2314, %v2314
    %v2379 = vmul.f32 %v2315, %v2315
    %v2380 = vmul.f32 %v2316, %v2316
    %v2381 = vmul.f32 %v2317, %v2317
    %v2382 = vmul.f32 %v2318, %v2318
    %v2383 = vmul.f32 %v2319, %v2319
    %v2384 = vmul.f32 %v2320, %v2320
    %v2385 = vmul.f32 %v2321, %v2321
    %v2386 = vrot.slane %v2378, 4
    %v2387 = vadd.f32 %v2378, %v2386
    %v2388 = vrot.slane %v2387, 2
    %v2389 = vadd.f32 %v2387, %v2388
    %v2390 = vrot.slane %v2389, 1
    %v2391 = vadd.f32 %v2389, %v2390
    %v2392 = vrot.slane %v2379, 4
    %v2393 = vadd.f32 %v2379, %v2392
    %v2394 = vrot.slane %v2393, 2
    %v2395 = vadd.f32 %v2393, %v2394
    %v2396 = vrot.slane %v2395, 1
    %v2397 = vadd.f32 %v2395, %v2396
    %v2398 = vrot.slane %v2380, 4
    %v2399 = vadd.f32 %v2380, %v2398
    %v2400 = vrot.slane %v2399, 2
    %v2401 = vadd.f32 %v2399, %v2400
    %v2402 = vrot.slane %v2401, 1
    %v2403 = vadd.f32 %v2401, %v2402
    %v2404 = vrot.slane %v2381, 4
    %v2405 = vadd.f32 %v2381, %v2404
    %v2406 = vrot.slane %v2405, 2
    %v2407 = vadd.f32 %v2405, %v2406
    %v2408 = vrot.slane %v2407, 1
    %v2409 = vadd.f32 %v2407, %v2408
    %v2410 = vrot.slane %v2382, 4
    %v2411 = vadd.f32 %v2382, %v2410
    %v2412 = vrot.slane %v2411, 2
    %v2413 = vadd.f32 %v2411, %v2412
    %v2414 = vrot.slane %v2413, 1
    %v2415 = vadd.f32 %v2413, %v2414
    %v2416 = vrot.slane %v2383, 4
    %v2417 = vadd.f32 %v2383, %v2416
    %v2418 = vrot.slane %v2417, 2
    %v2419 = vadd.f32 %v2417, %v2418
    %v2420 = vrot.slane %v2419, 1
    %v2421 = vadd.f32 %v2419, %v2420
    %v2422 = vrot.slane %v2384, 4
    %v2423 = vadd.f32 %v2384, %v2422
    %v2424 = vrot.slane %v2423, 2
    %v2425 = vadd.f32 %v2423, %v2424
    %v2426 = vrot.slane %v2425, 1
    %v2427 = vadd.f32 %v2425, %v2426
    %v2428 = vrot.slane %v2385, 4
    %v2429 = vadd.f32 %v2385, %v2428
    %v2430 = vrot.slane %v2429, 2
    %v2431 = vadd.f32 %v2429, %v2430
    %v2432 = vrot.slane %v2431, 1
    %v2433 = vadd.f32 %v2431, %v2432
    %2434 = vst [vmem:[#allocation9] sm:$0xff] %v2335
    %2435 = vst [vmem:[#allocation9 + $0x8] sm:$0xff] %v2341
    %2436 = vst [vmem:[#allocation9 + $0x10] sm:$0xff] %v2347
    %2437 = vst [vmem:[#allocation9 + $0x18] sm:$0xff] %v2353
    %2438 = vst [vmem:[#allocation9 + $0x20] sm:$0xff] %v2359
    %2439 = vst [vmem:[#allocation9 + $0x28] sm:$0xff] %v2365
    %2440 = vst [vmem:[#allocation9 + $0x30] sm:$0xff] %v2371
    %2441 = vst [vmem:[#allocation9 + $0x38] sm:$0xff] %v2377
    %2442 = vst [vmem:[#allocation11] sm:$0xff] %v2391
    %2443 = vst [vmem:[#allocation11 + $0x8] sm:$0xff] %v2397
    %2444 = vst [vmem:[#allocation11 + $0x10] sm:$0xff] %v2403
    %2445 = vst [vmem:[#allocation11 + $0x18] sm:$0xff] %v2409
    %2446 = vst [vmem:[#allocation11 + $0x20] sm:$0xff] %v2415
    %2447 = vst [vmem:[#allocation11 + $0x28] sm:$0xff] %v2421
    %2448 = vst [vmem:[#allocation11 + $0x30] sm:$0xff] %v2427
    %2449 = vst [vmem:[#allocation11 + $0x38] sm:$0xff] %v2433
    // Predicated region
    $region26: #{tpu_custom_call.1} parent=1 // pred_check
      _
    $region27: #{tpu_custom_call.1} parent=1 // pred_check_branch
      %2451 = sbr.rel (0) target = $region29
    $region28: #{tpu_custom_call.1} parent=1 // pred_region
      %s2453 = ssub.s32 1024, 1024
      %2454 = vsyncadd [#allocation4], %s2453
      %s2456 = sshll.u32 [#allocation8], 4
      %s2457 = int_to_ptr.vmem [resolvable:$true] %s2456
      %2459 = dma.vmem_to_hbm [thread:$0]  %s2457, 1024, %s3, [#allocation4]
    $region29: #{tpu_custom_call.1} parent=1 // pred_fallthru
      _
    // Predicated region
    $region30: #{tpu_custom_call.1} parent=1 // pred_check
      _
    $region31: #{tpu_custom_call.1} parent=1 // pred_check_branch
      %2461 = sbr.rel (0) target = $region33
    $region32: #{tpu_custom_call.1} parent=1 // pred_region
      %s2463 = ssub.s32 1024, 1024
      %2464 = vsyncadd [#allocation10], %s2463
      %s2466 = sshll.u32 [#allocation9], 4
      %s2467 = int_to_ptr.vmem [resolvable:$true] %s2466
      %2469 = dma.vmem_to_hbm [thread:$0]  %s2467, 1024, %s4, [#allocation10]
    $region33: #{tpu_custom_call.1} parent=1 // pred_fallthru
      _
    // Predicated region
    $region34: #{tpu_custom_call.1} parent=1 // pred_check
      _
    $region35: #{tpu_custom_call.1} parent=1 // pred_check_branch
      %2471 = sbr.rel (0) target = $region37
    $region36: #{tpu_custom_call.1} parent=1 // pred_region
      %s2473 = ssub.s32 1024, 1024
      %2474 = vsyncadd [#allocation10], %s2473
      %s2476 = sshll.u32 [#allocation11], 4
      %s2477 = int_to_ptr.vmem [resolvable:$true] %s2476
      %2479 = dma.vmem_to_hbm [thread:$0]  %s2477, 1024, %s5, [#allocation10]
    $region37: #{tpu_custom_call.1} parent=1 // pred_fallthru
      _
    // Predicated region
    $region38: #{tpu_custom_call.1} parent=1 // pred_check
      _
    $region39: #{tpu_custom_call.1} parent=1 // pred_check_branch
      %2481 = sbr.rel (0) target = $region41
    $region40: #{tpu_custom_call.1} parent=1 // pred_region
      %2482 = dma.done [#allocation4], 1024
    $region41: #{tpu_custom_call.1} parent=1 // pred_fallthru
      _
    // Predicated region
    $region42: #{tpu_custom_call.1} parent=1 // pred_check
      _
    $region43: #{tpu_custom_call.1} parent=1 // pred_check_branch
      %2484 = sbr.rel (0) target = $region45
    $region44: #{tpu_custom_call.1} parent=1 // pred_region
      %2485 = dma.done [#allocation10], 1024
    $region45: #{tpu_custom_call.1} parent=1 // pred_fallthru
      _
    // Predicated region
    $region46: #{tpu_custom_call.1} parent=1 // pred_check
      _
    $region47: #{tpu_custom_call.1} parent=1 // pred_check_branch
      %2487 = sbr.rel (0) target = $region49
    $region48: #{tpu_custom_call.1} parent=1 // pred_region
      %2488 = dma.done [#allocation10], 1024
    $region49: #{tpu_custom_call.1} parent=1 // pred_fallthru
      _
    %2489 = vsyncpa [#allocation3], 1
    %2490 = vsyncpa [#allocation6], 1
    %2491 = vsyncpa [#allocation4], 1
    %2492 = vsyncpa [#allocation10], 1

</llo_original>
